<compile_context>
chip_gen: v5e
topology: v5e:2x2
jax: 0.10.0
libtpu: 0.0.40
codegen_flags: <defaults>
</compile_context>

<pallas_src>
import functools

import jax
import jax.numpy as jnp
import numpy as np
from jax import lax
from jax.experimental import pallas as pl
from jax.experimental.pallas import tpu as pltpu


# ---------------------------------------------------------------------------
# Fused kernel: one grid step == one batch element, everything in VMEM.
# ---------------------------------------------------------------------------
def _fused_mha_kernel(q_ref, k_ref, v_ref, ln_ref, w_ref, fc_ref, cm_ref,
                      dyn_ref, attn_ref, *, n_head, d_k, d_v):
    HK = n_head * d_k
    HV = n_head * d_v

    def layer_norm(x, g, b):
        mu = jnp.mean(x, axis=-1, keepdims=True)
        var = jnp.mean((x - mu) ** 2, axis=-1, keepdims=True)
        return (x - mu) * lax.rsqrt(var + 1e-5) * g + b

    ln_p = ln_ref[...]                      # (6, D): [g1,b1,g2,b2,g3,b3]
    qn = layer_norm(q_ref[0], ln_p[0:1, :], ln_p[1:2, :])   # (Lq, D)
    kn = layer_norm(k_ref[0], ln_p[2:3, :], ln_p[3:4, :])   # (Lk, D)
    vn = layer_norm(v_ref[0], ln_p[4:5, :], ln_p[5:6, :])   # (Lv, D)

    w_all = w_ref[...]                      # (D, HK + HK + HV)
    # q projection weight is pre-scaled by 1/temperature in the wrapper.
    qp = jnp.dot(qn, w_all[:, :HK], preferred_element_type=jnp.float32)          # (Lq, HK)
    kp = jnp.dot(kn, w_all[:, HK:2 * HK], preferred_element_type=jnp.float32)    # (Lk, HK)
    vp = jnp.dot(vn, w_all[:, 2 * HK:2 * HK + HV],
                 preferred_element_type=jnp.float32)                             # (Lv, HV)

    cm = cm_ref[0]                          # (Lq, Lk) combined diag/pad mask

    head_outs = []
    for h in range(n_head):                 # static unrolled head loop
        qh = qp[:, h * d_k:(h + 1) * d_k]
        kh = kp[:, h * d_k:(h + 1) * d_k]
        vh = vp[:, h * d_v:(h + 1) * d_v]

        # scores: contract last dims (no explicit k transpose)
        s = lax.dot_general(qh, kh, (((1,), (1,)), ((), ())),
                            preferred_element_type=jnp.float32)                  # (Lq, Lk)
        s = s * cm
        s_max = jnp.max(s, axis=-1, keepdims=True)
        e = jnp.exp(s - s_max) * cm
        # exact divide kept (instead of approx reciprocal) to stay within the
        # 1e-5 verification tolerance against the pure-JAX reference.
        a = e / (jnp.sum(e, axis=-1, keepdims=True) + 1e-13)

        attn_ref[h, 0] = a
        head_outs.append(jnp.dot(a, vh, preferred_element_type=jnp.float32))

    # head merge (== permute(1,2,0,3).view in PyTorch): head-major on last dim
    dyn = jnp.concatenate(head_outs, axis=-1)                                    # (Lq, HV)
    dyn_ref[0] = jnp.dot(dyn, fc_ref[...], preferred_element_type=jnp.float32)   # (Lq, d_model)


# ---------------------------------------------------------------------------
# Full module forward (MultiHeadAttentionDi, static_flag=False, dropout=None)
# ---------------------------------------------------------------------------
def multi_head_attention_di(params, q, k, v, mask, *, n_head, d_k, d_v,
                            diag_mask_flag=True):
    B, Lq, D = q.shape
    _, Lk, _ = k.shape
    _, Lv, _ = v.shape
    HK, HV = n_head * d_k, n_head * d_v
    d_model = params["fc1_w"].shape[0]
    temperature = float(np.power(d_k, 0.5))

    # one-time host-side parameter prep (folded temperature, packed operands)
    wqT = params["w_qs"].T / temperature            # (D, HK), 1/temp folded in
    wkT = params["w_ks"].T                          # (D, HK)
    wvT = params["w_vs"].T                          # (D, HV)
    w_all = jnp.concatenate([wqT, wkT, wvT], axis=1).astype(jnp.float32)  # (D, 2HK+HV)
    fcT = params["fc1_w"].T.astype(jnp.float32)     # (HV, d_model)
    ln_p = jnp.stack([params["ln1_g"], params["ln1_b"],
                      params["ln2_g"], params["ln2_b"],
                      params["ln3_g"], params["ln3_b"]], axis=0).astype(jnp.float32)

    # combined mask, computed ONCE per batch element (no n_head tiling).
    # NOTE: like the original module, this assumes Lk == Lv.
    diag = jnp.ones((Lq, Lv), jnp.float32)
    if diag_mask_flag:
        diag = diag - jnp.eye(Lq, Lv, dtype=jnp.float32)
    cm = 1.0 - ((1.0 - diag[None] + mask.astype(jnp.float32)) > 0.0).astype(jnp.float32)

    kernel = functools.partial(_fused_mha_kernel, n_head=n_head, d_k=d_k, d_v=d_v)
    dyn, attn = pl.pallas_call(
        kernel,
        out_shape=(
            jax.ShapeDtypeStruct((B, Lq, d_model), jnp.float32),
            jax.ShapeDtypeStruct((n_head, B, Lq, Lk), jnp.float32),
        ),
        grid=(B,),
        in_specs=[
            pl.BlockSpec((1, Lq, D), lambda b: (b, 0, 0)),
            pl.BlockSpec((1, Lk, D), lambda b: (b, 0, 0)),
            pl.BlockSpec((1, Lv, D), lambda b: (b, 0, 0)),
            pl.BlockSpec((6, D), lambda b: (0, 0)),
            pl.BlockSpec((D, 2 * HK + HV), lambda b: (0, 0)),
            pl.BlockSpec((HV, d_model), lambda b: (0, 0)),
            pl.BlockSpec((1, Lq, Lk), lambda b: (b, 0, 0)),
        ],
        out_specs=(
            pl.BlockSpec((1, Lq, d_model), lambda b: (b, 0, 0)),
            pl.BlockSpec((n_head, 1, Lq, Lk), lambda b: (0, b, 0, 0)),
        ),
        compiler_params=pltpu.CompilerParams(dimension_semantics=("parallel",)),
    )(q, k, v, ln_p, w_all, fcT, cm)

    # (n_head, B, Lq, Lk) -> (n_head*B, Lq, Lk): contiguous, free reshape,
    # matches PyTorch's mask.repeat(n_head,1,1) head-major batch ordering.
    attn = attn.reshape(n_head * B, Lq, Lk)
    return dyn, attn
    # TODO(synk): dropout (module configured with dropout=None) and the
    # static_flag=True branch (fc2 on the static stream) are not implemented.


# ---------------------------------------------------------------------------
# Pure-JAX reference (mirrors the PyTorch forward exactly) for verification
# ---------------------------------------------------------------------------
def reference_forward(params, q, k, v, mask, *, n_head, d_k, d_v,
                      diag_mask_flag=True):
    def ln(x, g, b):
        mu = jnp.mean(x, -1, keepdims=True)
        var = jnp.mean((x - mu) ** 2, -1, keepdims=True)
        return (x - mu) / jnp.sqrt(var + 1e-5) * g + b

    B, Lq, _ = q.shape
    _, Lk, _ = k.shape
    _, Lv, _ = v.shape
    qn = ln(q, params["ln1_g"], params["ln1_b"]) @ params["w_qs"].T
    kn = ln(k, params["ln2_g"], params["ln2_b"]) @ params["w_ks"].T
    vn = ln(v, params["ln3_g"], params["ln3_b"]) @ params["w_vs"].T
    qh = qn.reshape(B, Lq, n_head, d_k).transpose(2, 0, 1, 3).reshape(-1, Lq, d_k)
    kh = kn.reshape(B, Lk, n_head, d_k).transpose(2, 0, 1, 3).reshape(-1, Lk, d_k)
    vh = vn.reshape(B, Lv, n_head, d_v).transpose(2, 0, 1, 3).reshape(-1, Lv, d_v)
    diag = jnp.ones((Lq, Lv), jnp.float32)
    if diag_mask_flag:
        diag = diag - jnp.eye(Lq, Lv, dtype=jnp.float32)
    diag = jnp.broadcast_to(diag, (n_head * B, Lq, Lv))
    m = jnp.tile(mask.astype(jnp.float32), (n_head, 1, 1))
    s = jnp.einsum("nqd,nkd->nqk", qh, kh) / np.power(d_k, 0.5)
    cm = 1.0 - ((1.0 - diag + m) > 0).astype(jnp.float32)
    a = jax.nn.softmax(s * cm, axis=-1)
    a = a * cm
    a = a / (a.sum(-1, keepdims=True) + 1e-13)
    out = jnp.einsum("nqk,nkd->nqd", a, vh)
    out = out.reshape(n_head, B, Lq, d_v).transpose(1, 2, 0, 3).reshape(B, Lq, -1)
    out = out @ params["fc1_w"].T
    return out, a


if __name__ == "__main__":
    # small shapes consistent with the module
    n_head, d_k, d_v = 4, 8, 8
    d_model, input_dim = 32, 32
    B, L = 2, 8

    key = jax.random.PRNGKey(0)
    ks = jax.random.split(key, 8)

    std_qk = np.sqrt(2.0 / (d_model + d_k))
    std_v = np.sqrt(2.0 / (d_model + d_v))
    lim_fc = 1.0 / np.sqrt(n_head * d_v)

    params = {
        "w_qs": std_qk * jax.random.normal(ks[0], (n_head * d_k, input_dim), jnp.float32),
        "w_ks": std_qk * jax.random.normal(ks[1], (n_head * d_k, input_dim), jnp.float32),
        "w_vs": std_v * jax.random.normal(ks[2], (n_head * d_v, input_dim), jnp.float32),
        "fc1_w": jax.random.uniform(ks[3], (d_model, n_head * d_v), jnp.float32,
                                    -lim_fc, lim_fc),
        "ln1_g": jnp.ones((input_dim,), jnp.float32),
        "ln1_b": jnp.zeros((input_dim,), jnp.float32),
        "ln2_g": jnp.ones((input_dim,), jnp.float32),
        "ln2_b": jnp.zeros((input_dim,), jnp.float32),
        "ln3_g": jnp.ones((input_dim,), jnp.float32),
        "ln3_b": jnp.zeros((input_dim,), jnp.float32),
    }

    q = jax.random.normal(ks[4], (B, L, input_dim), jnp.float32)
    k = jax.random.normal(ks[5], (B, L, input_dim), jnp.float32)
    v = jax.random.normal(ks[6], (B, L, input_dim), jnp.float32)
    mask = (jax.random.uniform(ks[7], (B, L, L)) < 0.2).astype(jnp.float32)

    dyn, attn = multi_head_attention_di(params, q, k, v, mask,
                                        n_head=n_head, d_k=d_k, d_v=d_v,
                                        diag_mask_flag=True)
    jax.block_until_ready(dyn)
    jax.block_until_ready(attn)

    dyn_ref, attn_ref = reference_forward(params, q, k, v, mask,
                                          n_head=n_head, d_k=d_k, d_v=d_v,
                                          diag_mask_flag=True)
    np.testing.assert_allclose(np.asarray(dyn), np.asarray(dyn_ref),
                               rtol=1e-5, atol=1e-5)
    np.testing.assert_allclose(np.asarray(attn), np.asarray(attn_ref),
                               rtol=1e-5, atol=1e-5)

    print("KERNEL_OK")
</pallas_src>

<mosaic_0001>
module attributes {stable_mosaic.version = 11 : i64} {
  func.func @_fused_mha_kernel(%arg0: i32, %arg1: memref<1x8x32xf32, #tpu.memory_space<vmem>>, %arg2: memref<1x8x32xf32, #tpu.memory_space<vmem>>, %arg3: memref<1x8x32xf32, #tpu.memory_space<vmem>>, %arg4: memref<6x32xf32, #tpu.memory_space<vmem>>, %arg5: memref<32x96xf32, #tpu.memory_space<vmem>>, %arg6: memref<32x32xf32, #tpu.memory_space<vmem>>, %arg7: memref<1x8x8xf32, #tpu.memory_space<vmem>>, %arg8: memref<1x8x32xf32, #tpu.memory_space<vmem>>, %arg9: memref<4x1x8x8xf32, #tpu.memory_space<vmem>>) attributes {dimension_semantics = [#tpu.dimension_semantics<parallel>], iteration_bounds = array<i64: 2>, scalar_prefetch = 0 : i64, scratch_operands = 0 : i64, tpu.core_type = #tpu.core_type<tc>, window_params = [{transform_indices = @transform_0, window_bounds = array<i64: 1, 8, 32>}, {transform_indices = @transform_1, window_bounds = array<i64: 1, 8, 32>}, {transform_indices = @transform_2, window_bounds = array<i64: 1, 8, 32>}, {pipeline_mode = #tpu.pipeline_mode<synchronous>, transform_indices = @transform_3, window_bounds = array<i64: 6, 32>}, {pipeline_mode = #tpu.pipeline_mode<synchronous>, transform_indices = @transform_4, window_bounds = array<i64: 32, 96>}, {pipeline_mode = #tpu.pipeline_mode<synchronous>, transform_indices = @transform_5, window_bounds = array<i64: 32, 32>}, {transform_indices = @transform_6, window_bounds = array<i64: 1, 8, 8>}, {transform_indices = @transform_7, window_bounds = array<i64: 1, 8, 32>}, {transform_indices = @transform_8, window_bounds = array<i64: 4, 1, 8, 8>}]} {
    %c0 = arith.constant 0 : index
    %c0_0 = arith.constant 0 : index
    %0 = vector.load %arg4[%c0, %c0_0] : memref<6x32xf32, #tpu.memory_space<vmem>>, vector<6x32xf32>
    %c0_1 = arith.constant 0 : index
    %c0_2 = arith.constant 0 : index
    %c0_3 = arith.constant 0 : index
    %1 = vector.load %arg1[%c0_1, %c0_2, %c0_3] : memref<1x8x32xf32, #tpu.memory_space<vmem>>, vector<1x8x32xf32>
    %2 = vector.shape_cast %1 : vector<1x8x32xf32> to vector<8x32xf32>
    %3 = vector.extract_strided_slice %0 {offsets = [0, 0], sizes = [1, 32], strides = [1, 1]} : vector<6x32xf32> to vector<1x32xf32>
    %4 = vector.extract_strided_slice %0 {offsets = [1, 0], sizes = [1, 32], strides = [1, 1]} : vector<6x32xf32> to vector<1x32xf32>
    %cst = arith.constant dense<0.000000e+00> : vector<8xf32>
    %5 = vector.multi_reduction <add>, %2, %cst [1] : vector<8x32xf32> to vector<8xf32>
    %6 = vector.shape_cast %5 : vector<8xf32> to vector<8x1xf32>
    %cst_4 = arith.constant 3.200000e+01 : f32
    %7 = vector.broadcast %cst_4 : f32 to vector<8x1xf32>
    %8 = arith.divf %6, %7 : vector<8x1xf32>
    %9 = vector.broadcast %8 : vector<8x1xf32> to vector<8x32xf32>
    %10 = arith.subf %2, %9 : vector<8x32xf32>
    %11 = arith.mulf %10, %10 : vector<8x32xf32>
    %cst_5 = arith.constant dense<0.000000e+00> : vector<8xf32>
    %12 = vector.multi_reduction <add>, %11, %cst_5 [1] : vector<8x32xf32> to vector<8xf32>
    %13 = vector.shape_cast %12 : vector<8xf32> to vector<8x1xf32>
    %cst_6 = arith.constant 3.200000e+01 : f32
    %14 = vector.broadcast %cst_6 : f32 to vector<8x1xf32>
    %15 = arith.divf %13, %14 : vector<8x1xf32>
    %16 = vector.broadcast %8 : vector<8x1xf32> to vector<8x32xf32>
    %17 = arith.subf %2, %16 : vector<8x32xf32>
    %cst_7 = arith.constant 9.99999974E-6 : f32
    %18 = vector.broadcast %cst_7 : f32 to vector<8x1xf32>
    %19 = arith.addf %15, %18 : vector<8x1xf32>
    %20 = math.rsqrt %19 : vector<8x1xf32>
    %21 = vector.broadcast %20 : vector<8x1xf32> to vector<8x32xf32>
    %22 = arith.mulf %17, %21 : vector<8x32xf32>
    %23 = vector.broadcast %3 : vector<1x32xf32> to vector<8x32xf32>
    %24 = arith.mulf %22, %23 : vector<8x32xf32>
    %25 = vector.broadcast %4 : vector<1x32xf32> to vector<8x32xf32>
    %26 = arith.addf %24, %25 : vector<8x32xf32>
    %c0_8 = arith.constant 0 : index
    %c0_9 = arith.constant 0 : index
    %c0_10 = arith.constant 0 : index
    %27 = vector.load %arg2[%c0_8, %c0_9, %c0_10] : memref<1x8x32xf32, #tpu.memory_space<vmem>>, vector<1x8x32xf32>
    %28 = vector.shape_cast %27 : vector<1x8x32xf32> to vector<8x32xf32>
    %29 = vector.extract_strided_slice %0 {offsets = [2, 0], sizes = [1, 32], strides = [1, 1]} : vector<6x32xf32> to vector<1x32xf32>
    %30 = vector.extract_strided_slice %0 {offsets = [3, 0], sizes = [1, 32], strides = [1, 1]} : vector<6x32xf32> to vector<1x32xf32>
    %cst_11 = arith.constant dense<0.000000e+00> : vector<8xf32>
    %31 = vector.multi_reduction <add>, %28, %cst_11 [1] : vector<8x32xf32> to vector<8xf32>
    %32 = vector.shape_cast %31 : vector<8xf32> to vector<8x1xf32>
    %cst_12 = arith.constant 3.200000e+01 : f32
    %33 = vector.broadcast %cst_12 : f32 to vector<8x1xf32>
    %34 = arith.divf %32, %33 : vector<8x1xf32>
    %35 = vector.broadcast %34 : vector<8x1xf32> to vector<8x32xf32>
    %36 = arith.subf %28, %35 : vector<8x32xf32>
    %37 = arith.mulf %36, %36 : vector<8x32xf32>
    %cst_13 = arith.constant dense<0.000000e+00> : vector<8xf32>
    %38 = vector.multi_reduction <add>, %37, %cst_13 [1] : vector<8x32xf32> to vector<8xf32>
    %39 = vector.shape_cast %38 : vector<8xf32> to vector<8x1xf32>
    %cst_14 = arith.constant 3.200000e+01 : f32
    %40 = vector.broadcast %cst_14 : f32 to vector<8x1xf32>
    %41 = arith.divf %39, %40 : vector<8x1xf32>
    %42 = vector.broadcast %34 : vector<8x1xf32> to vector<8x32xf32>
    %43 = arith.subf %28, %42 : vector<8x32xf32>
    %cst_15 = arith.constant 9.99999974E-6 : f32
    %44 = vector.broadcast %cst_15 : f32 to vector<8x1xf32>
    %45 = arith.addf %41, %44 : vector<8x1xf32>
    %46 = math.rsqrt %45 : vector<8x1xf32>
    %47 = vector.broadcast %46 : vector<8x1xf32> to vector<8x32xf32>
    %48 = arith.mulf %43, %47 : vector<8x32xf32>
    %49 = vector.broadcast %29 : vector<1x32xf32> to vector<8x32xf32>
    %50 = arith.mulf %48, %49 : vector<8x32xf32>
    %51 = vector.broadcast %30 : vector<1x32xf32> to vector<8x32xf32>
    %52 = arith.addf %50, %51 : vector<8x32xf32>
    %c0_16 = arith.constant 0 : index
    %c0_17 = arith.constant 0 : index
    %c0_18 = arith.constant 0 : index
    %53 = vector.load %arg3[%c0_16, %c0_17, %c0_18] : memref<1x8x32xf32, #tpu.memory_space<vmem>>, vector<1x8x32xf32>
    %54 = vector.shape_cast %53 : vector<1x8x32xf32> to vector<8x32xf32>
    %55 = vector.extract_strided_slice %0 {offsets = [4, 0], sizes = [1, 32], strides = [1, 1]} : vector<6x32xf32> to vector<1x32xf32>
    %56 = vector.extract_strided_slice %0 {offsets = [5, 0], sizes = [1, 32], strides = [1, 1]} : vector<6x32xf32> to vector<1x32xf32>
    %cst_19 = arith.constant dense<0.000000e+00> : vector<8xf32>
    %57 = vector.multi_reduction <add>, %54, %cst_19 [1] : vector<8x32xf32> to vector<8xf32>
    %58 = vector.shape_cast %57 : vector<8xf32> to vector<8x1xf32>
    %cst_20 = arith.constant 3.200000e+01 : f32
    %59 = vector.broadcast %cst_20 : f32 to vector<8x1xf32>
    %60 = arith.divf %58, %59 : vector<8x1xf32>
    %61 = vector.broadcast %60 : vector<8x1xf32> to vector<8x32xf32>
    %62 = arith.subf %54, %61 : vector<8x32xf32>
    %63 = arith.mulf %62, %62 : vector<8x32xf32>
    %cst_21 = arith.constant dense<0.000000e+00> : vector<8xf32>
    %64 = vector.multi_reduction <add>, %63, %cst_21 [1] : vector<8x32xf32> to vector<8xf32>
    %65 = vector.shape_cast %64 : vector<8xf32> to vector<8x1xf32>
    %cst_22 = arith.constant 3.200000e+01 : f32
    %66 = vector.broadcast %cst_22 : f32 to vector<8x1xf32>
    %67 = arith.divf %65, %66 : vector<8x1xf32>
    %68 = vector.broadcast %60 : vector<8x1xf32> to vector<8x32xf32>
    %69 = arith.subf %54, %68 : vector<8x32xf32>
    %cst_23 = arith.constant 9.99999974E-6 : f32
    %70 = vector.broadcast %cst_23 : f32 to vector<8x1xf32>
    %71 = arith.addf %67, %70 : vector<8x1xf32>
    %72 = math.rsqrt %71 : vector<8x1xf32>
    %73 = vector.broadcast %72 : vector<8x1xf32> to vector<8x32xf32>
    %74 = arith.mulf %69, %73 : vector<8x32xf32>
    %75 = vector.broadcast %55 : vector<1x32xf32> to vector<8x32xf32>
    %76 = arith.mulf %74, %75 : vector<8x32xf32>
    %77 = vector.broadcast %56 : vector<1x32xf32> to vector<8x32xf32>
    %78 = arith.addf %76, %77 : vector<8x32xf32>
    %c0_24 = arith.constant 0 : index
    %c0_25 = arith.constant 0 : index
    %79 = vector.load %arg5[%c0_24, %c0_25] : memref<32x96xf32, #tpu.memory_space<vmem>>, vector<32x96xf32>
    %80 = vector.extract_strided_slice %79 {offsets = [0, 0], sizes = [32, 32], strides = [1, 1]} : vector<32x96xf32> to vector<32x32xf32>
    %cst_26 = arith.constant dense<0.000000e+00> : vector<8x32xf32>
    %81 = tpu.matmul %26, %80, %cst_26 {dimension_numbers = #tpu.dot_dimension_numbers<[1], [0], [0], [1], [0, 0, 1, 1], [], []>} : vector<8x32xf32>, vector<32x32xf32>, vector<8x32xf32> -> vector<8x32xf32>
    %82 = vector.extract_strided_slice %79 {offsets = [0, 32], sizes = [32, 32], strides = [1, 1]} : vector<32x96xf32> to vector<32x32xf32>
    %cst_27 = arith.constant dense<0.000000e+00> : vector<8x32xf32>
    %83 = tpu.matmul %52, %82, %cst_27 {dimension_numbers = #tpu.dot_dimension_numbers<[1], [0], [0], [1], [0, 0, 1, 1], [], []>} : vector<8x32xf32>, vector<32x32xf32>, vector<8x32xf32> -> vector<8x32xf32>
    %84 = vector.extract_strided_slice %79 {offsets = [0, 64], sizes = [32, 32], strides = [1, 1]} : vector<32x96xf32> to vector<32x32xf32>
    %cst_28 = arith.constant dense<0.000000e+00> : vector<8x32xf32>
    %85 = tpu.matmul %78, %84, %cst_28 {dimension_numbers = #tpu.dot_dimension_numbers<[1], [0], [0], [1], [0, 0, 1, 1], [], []>} : vector<8x32xf32>, vector<32x32xf32>, vector<8x32xf32> -> vector<8x32xf32>
    %c0_29 = arith.constant 0 : index
    %c0_30 = arith.constant 0 : index
    %c0_31 = arith.constant 0 : index
    %86 = vector.load %arg7[%c0_29, %c0_30, %c0_31] : memref<1x8x8xf32, #tpu.memory_space<vmem>>, vector<1x8x8xf32>
    %87 = vector.shape_cast %86 : vector<1x8x8xf32> to vector<8x8xf32>
    %88 = vector.extract_strided_slice %81 {offsets = [0, 0], sizes = [8, 8], strides = [1, 1]} : vector<8x32xf32> to vector<8x8xf32>
    %89 = vector.extract_strided_slice %83 {offsets = [0, 0], sizes = [8, 8], strides = [1, 1]} : vector<8x32xf32> to vector<8x8xf32>
    %90 = vector.extract_strided_slice %85 {offsets = [0, 0], sizes = [8, 8], strides = [1, 1]} : vector<8x32xf32> to vector<8x8xf32>
    %cst_32 = arith.constant dense<0.000000e+00> : vector<8x8xf32>
    %91 = tpu.matmul %88, %89, %cst_32 {dimension_numbers = #tpu.dot_dimension_numbers<[1], [1], [0], [0], [0, 0, 1, 0], [], []>} : vector<8x8xf32>, vector<8x8xf32>, vector<8x8xf32> -> vector<8x8xf32>
    %92 = arith.mulf %91, %87 : vector<8x8xf32>
    %cst_33 = arith.constant dense<0xFF800000> : vector<8xf32>
    %93 = vector.multi_reduction <maximumf>, %92, %cst_33 [1] : vector<8x8xf32> to vector<8xf32>
    %94 = vector.shape_cast %93 : vector<8xf32> to vector<8x1xf32>
    %95 = vector.broadcast %94 : vector<8x1xf32> to vector<8x8xf32>
    %96 = arith.subf %92, %95 : vector<8x8xf32>
    %97 = math.exp %96 : vector<8x8xf32>
    %98 = arith.mulf %97, %87 : vector<8x8xf32>
    %cst_34 = arith.constant dense<0.000000e+00> : vector<8xf32>
    %99 = vector.multi_reduction <add>, %98, %cst_34 [1] : vector<8x8xf32> to vector<8xf32>
    %100 = vector.shape_cast %99 : vector<8xf32> to vector<8x1xf32>
    %cst_35 = arith.constant 9.99999982E-14 : f32
    %101 = vector.broadcast %cst_35 : f32 to vector<8x1xf32>
    %102 = arith.addf %100, %101 : vector<8x1xf32>
    %103 = vector.broadcast %102 : vector<8x1xf32> to vector<8x8xf32>
    %104 = arith.divf %98, %103 : vector<8x8xf32>
    %c0_36 = arith.constant 0 : index
    %c0_37 = arith.constant 0 : index
    %c0_38 = arith.constant 0 : index
    %c0_39 = arith.constant 0 : index
    %105 = vector.load %arg9[%c0_36, %c0_37, %c0_38, %c0_39] : memref<4x1x8x8xf32, #tpu.memory_space<vmem>>, vector<1x1x8x8xf32>
    %106 = vector.shape_cast %105 : vector<1x1x8x8xf32> to vector<8x8xf32>
    %107 = vector.shape_cast %104 : vector<8x8xf32> to vector<1x1x8x8xf32>
    tpu.vector_store %arg9[%c0_36, %c0_37, %c0_38, %c0_39], %107 {strides = array<i32>} : memref<4x1x8x8xf32, #tpu.memory_space<vmem>>, vector<1x1x8x8xf32>,
    %cst_40 = arith.constant dense<0.000000e+00> : vector<8x8xf32>
    %108 = tpu.matmul %104, %90, %cst_40 {dimension_numbers = #tpu.dot_dimension_numbers<[1], [0], [0], [1], [0, 0, 1, 1], [], []>} : vector<8x8xf32>, vector<8x8xf32>, vector<8x8xf32> -> vector<8x8xf32>
    %109 = vector.extract_strided_slice %81 {offsets = [0, 8], sizes = [8, 8], strides = [1, 1]} : vector<8x32xf32> to vector<8x8xf32>
    %110 = vector.extract_strided_slice %83 {offsets = [0, 8], sizes = [8, 8], strides = [1, 1]} : vector<8x32xf32> to vector<8x8xf32>
    %111 = vector.extract_strided_slice %85 {offsets = [0, 8], sizes = [8, 8], strides = [1, 1]} : vector<8x32xf32> to vector<8x8xf32>
    %cst_41 = arith.constant dense<0.000000e+00> : vector<8x8xf32>
    %112 = tpu.matmul %109, %110, %cst_41 {dimension_numbers = #tpu.dot_dimension_numbers<[1], [1], [0], [0], [0, 0, 1, 0], [], []>} : vector<8x8xf32>, vector<8x8xf32>, vector<8x8xf32> -> vector<8x8xf32>
    %113 = arith.mulf %112, %87 : vector<8x8xf32>
    %cst_42 = arith.constant dense<0xFF800000> : vector<8xf32>
    %114 = vector.multi_reduction <maximumf>, %113, %cst_42 [1] : vector<8x8xf32> to vector<8xf32>
    %115 = vector.shape_cast %114 : vector<8xf32> to vector<8x1xf32>
    %116 = vector.broadcast %115 : vector<8x1xf32> to vector<8x8xf32>
    %117 = arith.subf %113, %116 : vector<8x8xf32>
    %118 = math.exp %117 : vector<8x8xf32>
    %119 = arith.mulf %118, %87 : vector<8x8xf32>
    %cst_43 = arith.constant dense<0.000000e+00> : vector<8xf32>
    %120 = vector.multi_reduction <add>, %119, %cst_43 [1] : vector<8x8xf32> to vector<8xf32>
    %121 = vector.shape_cast %120 : vector<8xf32> to vector<8x1xf32>
    %cst_44 = arith.constant 9.99999982E-14 : f32
    %122 = vector.broadcast %cst_44 : f32 to vector<8x1xf32>
    %123 = arith.addf %121, %122 : vector<8x1xf32>
    %124 = vector.broadcast %123 : vector<8x1xf32> to vector<8x8xf32>
    %125 = arith.divf %119, %124 : vector<8x8xf32>
    %c1 = arith.constant 1 : index
    %c0_45 = arith.constant 0 : index
    %c0_46 = arith.constant 0 : index
    %c0_47 = arith.constant 0 : index
    %126 = vector.load %arg9[%c1, %c0_45, %c0_46, %c0_47] : memref<4x1x8x8xf32, #tpu.memory_space<vmem>>, vector<1x1x8x8xf32>
    %127 = vector.shape_cast %126 : vector<1x1x8x8xf32> to vector<8x8xf32>
    %128 = vector.shape_cast %125 : vector<8x8xf32> to vector<1x1x8x8xf32>
    tpu.vector_store %arg9[%c1, %c0_45, %c0_46, %c0_47], %128 {strides = array<i32>} : memref<4x1x8x8xf32, #tpu.memory_space<vmem>>, vector<1x1x8x8xf32>,
    %cst_48 = arith.constant dense<0.000000e+00> : vector<8x8xf32>
    %129 = tpu.matmul %125, %111, %cst_48 {dimension_numbers = #tpu.dot_dimension_numbers<[1], [0], [0], [1], [0, 0, 1, 1], [], []>} : vector<8x8xf32>, vector<8x8xf32>, vector<8x8xf32> -> vector<8x8xf32>
    %130 = vector.extract_strided_slice %81 {offsets = [0, 16], sizes = [8, 8], strides = [1, 1]} : vector<8x32xf32> to vector<8x8xf32>
    %131 = vector.extract_strided_slice %83 {offsets = [0, 16], sizes = [8, 8], strides = [1, 1]} : vector<8x32xf32> to vector<8x8xf32>
    %132 = vector.extract_strided_slice %85 {offsets = [0, 16], sizes = [8, 8], strides = [1, 1]} : vector<8x32xf32> to vector<8x8xf32>
    %cst_49 = arith.constant dense<0.000000e+00> : vector<8x8xf32>
    %133 = tpu.matmul %130, %131, %cst_49 {dimension_numbers = #tpu.dot_dimension_numbers<[1], [1], [0], [0], [0, 0, 1, 0], [], []>} : vector<8x8xf32>, vector<8x8xf32>, vector<8x8xf32> -> vector<8x8xf32>
    %134 = arith.mulf %133, %87 : vector<8x8xf32>
    %cst_50 = arith.constant dense<0xFF800000> : vector<8xf32>
    %135 = vector.multi_reduction <maximumf>, %134, %cst_50 [1] : vector<8x8xf32> to vector<8xf32>
    %136 = vector.shape_cast %135 : vector<8xf32> to vector<8x1xf32>
    %137 = vector.broadcast %136 : vector<8x1xf32> to vector<8x8xf32>
    %138 = arith.subf %134, %137 : vector<8x8xf32>
    %139 = math.exp %138 : vector<8x8xf32>
    %140 = arith.mulf %139, %87 : vector<8x8xf32>
    %cst_51 = arith.constant dense<0.000000e+00> : vector<8xf32>
    %141 = vector.multi_reduction <add>, %140, %cst_51 [1] : vector<8x8xf32> to vector<8xf32>
    %142 = vector.shape_cast %141 : vector<8xf32> to vector<8x1xf32>
    %cst_52 = arith.constant 9.99999982E-14 : f32
    %143 = vector.broadcast %cst_52 : f32 to vector<8x1xf32>
    %144 = arith.addf %142, %143 : vector<8x1xf32>
    %145 = vector.broadcast %144 : vector<8x1xf32> to vector<8x8xf32>
    %146 = arith.divf %140, %145 : vector<8x8xf32>
    %c2 = arith.constant 2 : index
    %c0_53 = arith.constant 0 : index
    %c0_54 = arith.constant 0 : index
    %c0_55 = arith.constant 0 : index
    %147 = vector.load %arg9[%c2, %c0_53, %c0_54, %c0_55] : memref<4x1x8x8xf32, #tpu.memory_space<vmem>>, vector<1x1x8x8xf32>
    %148 = vector.shape_cast %147 : vector<1x1x8x8xf32> to vector<8x8xf32>
    %149 = vector.shape_cast %146 : vector<8x8xf32> to vector<1x1x8x8xf32>
    tpu.vector_store %arg9[%c2, %c0_53, %c0_54, %c0_55], %149 {strides = array<i32>} : memref<4x1x8x8xf32, #tpu.memory_space<vmem>>, vector<1x1x8x8xf32>,
    %cst_56 = arith.constant dense<0.000000e+00> : vector<8x8xf32>
    %150 = tpu.matmul %146, %132, %cst_56 {dimension_numbers = #tpu.dot_dimension_numbers<[1], [0], [0], [1], [0, 0, 1, 1], [], []>} : vector<8x8xf32>, vector<8x8xf32>, vector<8x8xf32> -> vector<8x8xf32>
    %151 = vector.extract_strided_slice %81 {offsets = [0, 24], sizes = [8, 8], strides = [1, 1]} : vector<8x32xf32> to vector<8x8xf32>
    %152 = vector.extract_strided_slice %83 {offsets = [0, 24], sizes = [8, 8], strides = [1, 1]} : vector<8x32xf32> to vector<8x8xf32>
    %153 = vector.extract_strided_slice %85 {offsets = [0, 24], sizes = [8, 8], strides = [1, 1]} : vector<8x32xf32> to vector<8x8xf32>
    %cst_57 = arith.constant dense<0.000000e+00> : vector<8x8xf32>
    %154 = tpu.matmul %151, %152, %cst_57 {dimension_numbers = #tpu.dot_dimension_numbers<[1], [1], [0], [0], [0, 0, 1, 0], [], []>} : vector<8x8xf32>, vector<8x8xf32>, vector<8x8xf32> -> vector<8x8xf32>
    %155 = arith.mulf %154, %87 : vector<8x8xf32>
    %cst_58 = arith.constant dense<0xFF800000> : vector<8xf32>
    %156 = vector.multi_reduction <maximumf>, %155, %cst_58 [1] : vector<8x8xf32> to vector<8xf32>
    %157 = vector.shape_cast %156 : vector<8xf32> to vector<8x1xf32>
    %158 = vector.broadcast %157 : vector<8x1xf32> to vector<8x8xf32>
    %159 = arith.subf %155, %158 : vector<8x8xf32>
    %160 = math.exp %159 : vector<8x8xf32>
    %161 = arith.mulf %160, %87 : vector<8x8xf32>
    %cst_59 = arith.constant dense<0.000000e+00> : vector<8xf32>
    %162 = vector.multi_reduction <add>, %161, %cst_59 [1] : vector<8x8xf32> to vector<8xf32>
    %163 = vector.shape_cast %162 : vector<8xf32> to vector<8x1xf32>
    %cst_60 = arith.constant 9.99999982E-14 : f32
    %164 = vector.broadcast %cst_60 : f32 to vector<8x1xf32>
    %165 = arith.addf %163, %164 : vector<8x1xf32>
    %166 = vector.broadcast %165 : vector<8x1xf32> to vector<8x8xf32>
    %167 = arith.divf %161, %166 : vector<8x8xf32>
    %c3 = arith.constant 3 : index
    %c0_61 = arith.constant 0 : index
    %c0_62 = arith.constant 0 : index
    %c0_63 = arith.constant 0 : index
    %168 = vector.load %arg9[%c3, %c0_61, %c0_62, %c0_63] : memref<4x1x8x8xf32, #tpu.memory_space<vmem>>, vector<1x1x8x8xf32>
    %169 = vector.shape_cast %168 : vector<1x1x8x8xf32> to vector<8x8xf32>
    %170 = vector.shape_cast %167 : vector<8x8xf32> to vector<1x1x8x8xf32>
    tpu.vector_store %arg9[%c3, %c0_61, %c0_62, %c0_63], %170 {strides = array<i32>} : memref<4x1x8x8xf32, #tpu.memory_space<vmem>>, vector<1x1x8x8xf32>,
    %cst_64 = arith.constant dense<0.000000e+00> : vector<8x8xf32>
    %171 = tpu.matmul %167, %153, %cst_64 {dimension_numbers = #tpu.dot_dimension_numbers<[1], [0], [0], [1], [0, 0, 1, 1], [], []>} : vector<8x8xf32>, vector<8x8xf32>, vector<8x8xf32> -> vector<8x8xf32>
    %172 = tpu.concatenate %108, %129, %150, %171 in 1 : vector<8x8xf32>, vector<8x8xf32>, vector<8x8xf32>, vector<8x8xf32> -> vector<8x32xf32>
    %c0_65 = arith.constant 0 : index
    %c0_66 = arith.constant 0 : index
    %173 = vector.load %arg6[%c0_65, %c0_66] : memref<32x32xf32, #tpu.memory_space<vmem>>, vector<32x32xf32>
    %cst_67 = arith.constant dense<0.000000e+00> : vector<8x32xf32>
    %174 = tpu.matmul %172, %173, %cst_67 {dimension_numbers = #tpu.dot_dimension_numbers<[1], [0], [0], [1], [0, 0, 1, 1], [], []>} : vector<8x32xf32>, vector<32x32xf32>, vector<8x32xf32> -> vector<8x32xf32>
    %c0_68 = arith.constant 0 : index
    %c0_69 = arith.constant 0 : index
    %c0_70 = arith.constant 0 : index
    %175 = vector.load %arg8[%c0_68, %c0_69, %c0_70] : memref<1x8x32xf32, #tpu.memory_space<vmem>>, vector<1x8x32xf32>
    %176 = vector.shape_cast %175 : vector<1x8x32xf32> to vector<8x32xf32>
    %177 = vector.shape_cast %174 : vector<8x32xf32> to vector<1x8x32xf32>
    tpu.vector_store %arg8[%c0_68, %c0_69, %c0_70], %177 {strides = array<i32>} : memref<1x8x32xf32, #tpu.memory_space<vmem>>, vector<1x8x32xf32>,
    return
  }
  func.func @transform_0(%arg0: i32) -> (i32, i32, i32) {
    %c0_i32 = arith.constant 0 : i32
    %c0_i32_0 = arith.constant 0 : i32
    %c0_i32_1 = arith.constant 0 : i32
    return %arg0, %c0_i32, %c0_i32_0 : i32, i32, i32
  }
  func.func @transform_1(%arg0: i32) -> (i32, i32, i32) {
    %c0_i32 = arith.constant 0 : i32
    %c0_i32_0 = arith.constant 0 : i32
    %c0_i32_1 = arith.constant 0 : i32
    return %arg0, %c0_i32, %c0_i32_0 : i32, i32, i32
  }
  func.func @transform_2(%arg0: i32) -> (i32, i32, i32) {
    %c0_i32 = arith.constant 0 : i32
    %c0_i32_0 = arith.constant 0 : i32
    %c0_i32_1 = arith.constant 0 : i32
    return %arg0, %c0_i32, %c0_i32_0 : i32, i32, i32
  }
  func.func @transform_3(%arg0: i32) -> (i32, i32) {
    %c0_i32 = arith.constant 0 : i32
    %c0_i32_0 = arith.constant 0 : i32
    %c0_i32_1 = arith.constant 0 : i32
    return %c0_i32, %c0_i32_0 : i32, i32
  }
  func.func @transform_4(%arg0: i32) -> (i32, i32) {
    %c0_i32 = arith.constant 0 : i32
    %c0_i32_0 = arith.constant 0 : i32
    %c0_i32_1 = arith.constant 0 : i32
    return %c0_i32, %c0_i32_0 : i32, i32
  }
  func.func @transform_5(%arg0: i32) -> (i32, i32) {
    %c0_i32 = arith.constant 0 : i32
    %c0_i32_0 = arith.constant 0 : i32
    %c0_i32_1 = arith.constant 0 : i32
    return %c0_i32, %c0_i32_0 : i32, i32
  }
  func.func @transform_6(%arg0: i32) -> (i32, i32, i32) {
    %c0_i32 = arith.constant 0 : i32
    %c0_i32_0 = arith.constant 0 : i32
    %c0_i32_1 = arith.constant 0 : i32
    return %arg0, %c0_i32, %c0_i32_0 : i32, i32, i32
  }
  func.func @transform_7(%arg0: i32) -> (i32, i32, i32) {
    %c0_i32 = arith.constant 0 : i32
    %c0_i32_0 = arith.constant 0 : i32
    %c0_i32_1 = arith.constant 0 : i32
    return %arg0, %c0_i32, %c0_i32_0 : i32, i32, i32
  }
  func.func @transform_8(%arg0: i32) -> (i32, i32, i32, i32) {
    %c0_i32 = arith.constant 0 : i32
    %c0_i32_0 = arith.constant 0 : i32
    %c0_i32_1 = arith.constant 0 : i32
    %c0_i32_2 = arith.constant 0 : i32
    return %c0_i32, %arg0, %c0_i32_0, %c0_i32_1 : i32, i32, i32, i32
  }
}

</mosaic_0001>

<llo_original>
// kernel: tpu_custom_call.1
$region0: #{tpu_custom_call.1}
  #allocation0 [shape = 'u32[]', space=smem, size = 0x4, offset = 0x4, fixed_abs, tag = 'smem constant byte address 0x4 - core index']
  #allocation1 [shape = 'u32[72,128]{1,0:T(1,128)}', space=vmem, size = 0x9000, scoped, tag = 'internal scratch']
  %s0 = inlined_call_operand.hbm [shape: f32[2,8,32], index: 0, kind: input, shape index: {}]
  %s1 = inlined_call_operand.hbm [shape: f32[2,8,32], index: 1, kind: input, shape index: {}]
  %s2 = inlined_call_operand.hbm [shape: f32[2,8,32], index: 2, kind: input, shape index: {}]
  %s3 = inlined_call_operand.hbm [shape: f32[6,32], index: 3, kind: input, shape index: {}]
  %s4 = inlined_call_operand.hbm [shape: f32[32,96], index: 4, kind: input, shape index: {}]
  %s5 = inlined_call_operand.hbm [shape: f32[32,32], index: 5, kind: input, shape index: {}]
  %s6 = inlined_call_operand.hbm [shape: f32[2,8,8], index: 6, kind: input, shape index: {}]
  %s7 = inlined_call_operand.hbm [shape: f32[2,8,32], index: 7, kind: output, shape index: {0}]
  %s8 = inlined_call_operand.hbm [shape: f32[4,2,8,8], index: 8, kind: output, shape index: {1}]
  %9 = xla_tuple %s7, %s8
  %s10 = sld [smem:[#allocation0]]
  $region97: #{tpu_custom_call.1} parent=0
    _
  %s12 = ssub.s32 1, %s10
  %s13 = scalar_select 0, %s12, %s10
  $region1: #{tpu_custom_call.1} parent=0
    #allocation2 [shape = 'u8[8192]{0}', space=vmem, size = 0x2000, scoped, tag = 'input window, operand 0']
    #allocation3 [shape = 's32[2]{0}', space=sflag, size = 0x8, scoped, tag = 'scoped memory for tpu_custom_call.1']
    #allocation4 [shape = 's32[2]{0}', space=sflag, size = 0x8, scoped, tag = 'scoped memory for tpu_custom_call.1']
    #allocation5 [shape = 'u8[8192]{0}', space=vmem, size = 0x2000, scoped, tag = 'input window, operand 1']
    #allocation6 [shape = 's32[2]{0}', space=sflag, size = 0x8, scoped, tag = 'scoped memory for tpu_custom_call.1']
    #allocation7 [shape = 'u8[8192]{0}', space=vmem, size = 0x2000, scoped, tag = 'input window, operand 2']
    #allocation8 [shape = 'u8[4096]{0}', space=vmem, size = 0x1000, scoped, tag = 'input window, operand 3, single buffered']
    #allocation9 [shape = 's32[1]{0}', space=sflag, size = 0x4, scoped, tag = 'scoped memory for tpu_custom_call.1']
    #allocation10 [shape = 'u8[16384]{0}', space=vmem, size = 0x4000, scoped, tag = 'input window, operand 4, single buffered']
    #allocation11 [shape = 'u8[16384]{0}', space=vmem, size = 0x4000, scoped, tag = 'input window, operand 5, single buffered']
    #allocation12 [shape = 's32[1]{0}', space=sflag, size = 0x4, scoped, tag = 'scoped memory for tpu_custom_call.1']
    #allocation13 [shape = 'u8[8192]{0}', space=vmem, size = 0x2000, scoped, tag = 'input window, operand 6']
    #allocation14 [shape = 'u8[8192]{0}', space=vmem, size = 0x2000, scoped, tag = 'output window, operand 0']
    #allocation15 [shape = 'u8[32768]{0}', space=vmem, size = 0x8000, scoped, tag = 'output window, operand 1']
    #allocation16 [shape = 's32[2]{0}', space=sflag, size = 0x8, scoped, tag = 'scoped memory for tpu_custom_call.1']
    %14 = vsyncpa [#allocation3], 0
    %s15 = scalar_lea.sflag [#allocation3], 1
    %16 = vsyncpa %s15, 0
    %17 = vsyncpa [#allocation6], 0
    %s18 = scalar_lea.sflag [#allocation6], 1
    %19 = vsyncpa %s18, 0
    %20 = vsyncpa [#allocation9], 0
    %21 = vsyncpa [#allocation12], 0
    %22 = vsyncpa [#allocation4], 0
    %s23 = scalar_lea.sflag [#allocation4], 1
    %24 = vsyncpa %s23, 0
    %25 = vsyncpa [#allocation16], 0
    %s26 = scalar_lea.sflag [#allocation16], 1
    %27 = vsyncpa %s26, 0
    loop: start=0, step=1, limit=4
    $region2: #{tpu_custom_call.1} parent=1 // loop_pre_header
      _
    $region3: #{tpu_custom_call.1} parent=1 // loop_header
      %s29 = sphi 0, %s33
      %p30 = scmp.ge.s32.totalorder %s29, 4
      %s39 = sphi 0, %s41
      %s42 = sphi 0, %s39
      %s43 = sphi 0, %s42
      %s59 = sphi 0, %s43
      %s65 = sphi 0, %s67
      %s68 = sphi 0, %s65
      %s69 = sphi 0, %s68
      %s85 = sphi 0, %s69
      %s91 = sphi 0, %s93
      %s94 = sphi 0, %s91
      %s95 = sphi 0, %s94
      %s111 = sphi 0, %s95
      %s115 = sphi 0, %s115
      %s117 = sphi 0, %s115
      %s118 = sphi 0, %s117
      %s132 = sphi 0, %s118
      %s136 = sphi 0, %s136
      %s138 = sphi 0, %s136
      %s139 = sphi 0, %s138
      %s153 = sphi 0, %s139
      %s157 = sphi 0, %s157
      %s159 = sphi 0, %s157
      %s160 = sphi 0, %s159
      %s174 = sphi 0, %s160
      %s180 = sphi 0, %s182
      %s183 = sphi 0, %s180
      %s184 = sphi 0, %s183
      %s200 = sphi 0, %s184
      %s206 = sphi 0, %s208
      %s209 = sphi 0, %s206
      %s210 = sphi 0, %s209
      %s226 = sphi 0, %s210
      %s232 = sphi 0, %s234
      %s235 = sphi 0, %s232
      %s236 = sphi 0, %s235
      %s252 = sphi 0, %s236
    $region4: #{tpu_custom_call.1} parent=1 // loop_header_branch
      %32 = sbr.rel (%p30) target = $region8
    $region5: #{tpu_custom_call.1} parent=1 // loop_body
      %s34 = ssub.s32 %s29, 1
      %s35 = ssub.s32 %s29, 2
      %s36 = sadd.s32 %s29, 1
      %s37 = ssub.s32 %s29, %s36
      %p38 = scmp.eq.s32.totalorder %s37, 0
      %s40 = sadd.s32 %s39, 1
      %s41 = scalar_select %p38, %s39, %s40
      %p44 = pneg %p38
      %p45 = scmp.eq.s32.totalorder %s29, 1
      %p46 = por %p44, %p45
      %p47 = scmp.ne.s32.totalorder %s39, %s42
      %p48 = scmp.eq.s32.totalorder %s29, 0
      %p49 = por %p47, %p48
      %p50 = scmp.ne.s32.totalorder %s39, %s42
      %p51 = scmp.eq.s32.totalorder %s34, 1
      %p52 = por %p50, %p51
      %p53 = scmp.ne.s32.totalorder %s42, %s43
      %p54 = scmp.eq.s32.totalorder %s34, 0
      %p55 = por %p53, %p54
      %p56 = scmp.ne.s32.totalorder %s42, %s43
      %p57 = scmp.eq.s32.totalorder %s35, 1
      %p58 = por %p56, %p57
      %p60 = scmp.ne.s32.totalorder %s43, %s59
      %p61 = scmp.eq.s32.totalorder %s35, 0
      %p62 = por %p60, %p61
      %s63 = ssub.s32 %s29, %s36
      %p64 = scmp.eq.s32.totalorder %s63, 0
      %s66 = sadd.s32 %s65, 1
      %s67 = scalar_select %p64, %s65, %s66
      %p70 = pneg %p64
      %p71 = scmp.eq.s32.totalorder %s29, 1
      %p72 = por %p70, %p71
      %p73 = scmp.ne.s32.totalorder %s65, %s68
      %p74 = scmp.eq.s32.totalorder %s29, 0
      %p75 = por %p73, %p74
      %p76 = scmp.ne.s32.totalorder %s65, %s68
      %p77 = scmp.eq.s32.totalorder %s34, 1
      %p78 = por %p76, %p77
      %p79 = scmp.ne.s32.totalorder %s68, %s69
      %p80 = scmp.eq.s32.totalorder %s34, 0
      %p81 = por %p79, %p80
      %p82 = scmp.ne.s32.totalorder %s68, %s69
      %p83 = scmp.eq.s32.totalorder %s35, 1
      %p84 = por %p82, %p83
      %p86 = scmp.ne.s32.totalorder %s69, %s85
      %p87 = scmp.eq.s32.totalorder %s35, 0
      %p88 = por %p86, %p87
      %s89 = ssub.s32 %s29, %s36
      %p90 = scmp.eq.s32.totalorder %s89, 0
      %s92 = sadd.s32 %s91, 1
      %s93 = scalar_select %p90, %s91, %s92
      %p96 = pneg %p90
      %p97 = scmp.eq.s32.totalorder %s29, 1
      %p98 = por %p96, %p97
      %p99 = scmp.ne.s32.totalorder %s91, %s94
      %p100 = scmp.eq.s32.totalorder %s29, 0
      %p101 = por %p99, %p100
      %p102 = scmp.ne.s32.totalorder %s91, %s94
      %p103 = scmp.eq.s32.totalorder %s34, 1
      %p104 = por %p102, %p103
      %p105 = scmp.ne.s32.totalorder %s94, %s95
      %p106 = scmp.eq.s32.totalorder %s34, 0
      %p107 = por %p105, %p106
      %p108 = scmp.ne.s32.totalorder %s94, %s95
      %p109 = scmp.eq.s32.totalorder %s35, 1
      %p110 = por %p108, %p109
      %p112 = scmp.ne.s32.totalorder %s95, %s111
      %p113 = scmp.eq.s32.totalorder %s35, 0
      %p114 = por %p112, %p113
      %s116 = sadd.s32 %s115, 1
      %p119 = scmp.eq.s32.totalorder %s29, 1
      %p120 = scmp.ne.s32.totalorder %s115, %s117
      %p121 = scmp.eq.s32.totalorder %s29, 0
      %p122 = por %p120, %p121
      %p123 = scmp.ne.s32.totalorder %s115, %s117
      %p124 = scmp.eq.s32.totalorder %s34, 1
      %p125 = por %p123, %p124
      %p126 = scmp.ne.s32.totalorder %s117, %s118
      %p127 = scmp.eq.s32.totalorder %s34, 0
      %p128 = por %p126, %p127
      %p129 = scmp.ne.s32.totalorder %s117, %s118
      %p130 = scmp.eq.s32.totalorder %s35, 1
      %p131 = por %p129, %p130
      %p133 = scmp.ne.s32.totalorder %s118, %s132
      %p134 = scmp.eq.s32.totalorder %s35, 0
      %p135 = por %p133, %p134
      %s137 = sadd.s32 %s136, 1
      %p140 = scmp.eq.s32.totalorder %s29, 1
      %p141 = scmp.ne.s32.totalorder %s136, %s138
      %p142 = scmp.eq.s32.totalorder %s29, 0
      %p143 = por %p141, %p142
      %p144 = scmp.ne.s32.totalorder %s136, %s138
      %p145 = scmp.eq.s32.totalorder %s34, 1
      %p146 = por %p144, %p145
      %p147 = scmp.ne.s32.totalorder %s138, %s139
      %p148 = scmp.eq.s32.totalorder %s34, 0
      %p149 = por %p147, %p148
      %p150 = scmp.ne.s32.totalorder %s138, %s139
      %p151 = scmp.eq.s32.totalorder %s35, 1
      %p152 = por %p150, %p151
      %p154 = scmp.ne.s32.totalorder %s139, %s153
      %p155 = scmp.eq.s32.totalorder %s35, 0
      %p156 = por %p154, %p155
      %s158 = sadd.s32 %s157, 1
      %p161 = scmp.eq.s32.totalorder %s29, 1
      %p162 = scmp.ne.s32.totalorder %s157, %s159
      %p163 = scmp.eq.s32.totalorder %s29, 0
      %p164 = por %p162, %p163
      %p165 = scmp.ne.s32.totalorder %s157, %s159
      %p166 = scmp.eq.s32.totalorder %s34, 1
      %p167 = por %p165, %p166
      %p168 = scmp.ne.s32.totalorder %s159, %s160
      %p169 = scmp.eq.s32.totalorder %s34, 0
      %p170 = por %p168, %p169
      %p171 = scmp.ne.s32.totalorder %s159, %s160
      %p172 = scmp.eq.s32.totalorder %s35, 1
      %p173 = por %p171, %p172
      %p175 = scmp.ne.s32.totalorder %s160, %s174
      %p176 = scmp.eq.s32.totalorder %s35, 0
      %p177 = por %p175, %p176
      %s178 = ssub.s32 %s29, %s36
      %p179 = scmp.eq.s32.totalorder %s178, 0
      %s181 = sadd.s32 %s180, 1
      %s182 = scalar_select %p179, %s180, %s181
      %p185 = pneg %p179
      %p186 = scmp.eq.s32.totalorder %s29, 1
      %p187 = por %p185, %p186
      %p188 = scmp.ne.s32.totalorder %s180, %s183
      %p189 = scmp.eq.s32.totalorder %s29, 0
      %p190 = por %p188, %p189
      %p191 = scmp.ne.s32.totalorder %s180, %s183
      %p192 = scmp.eq.s32.totalorder %s34, 1
      %p193 = por %p191, %p192
      %p194 = scmp.ne.s32.totalorder %s183, %s184
      %p195 = scmp.eq.s32.totalorder %s34, 0
      %p196 = por %p194, %p195
      %p197 = scmp.ne.s32.totalorder %s183, %s184
      %p198 = scmp.eq.s32.totalorder %s35, 1
      %p199 = por %p197, %p198
      %p201 = scmp.ne.s32.totalorder %s184, %s200
      %p202 = scmp.eq.s32.totalorder %s35, 0
      %p203 = por %p201, %p202
      %s204 = ssub.s32 %s29, %s36
      %p205 = scmp.eq.s32.totalorder %s204, 0
      %s207 = sadd.s32 %s206, 1
      %s208 = scalar_select %p205, %s206, %s207
      %p211 = pneg %p205
      %p212 = scmp.eq.s32.totalorder %s29, 1
      %p213 = por %p211, %p212
      %p214 = scmp.ne.s32.totalorder %s206, %s209
      %p215 = scmp.eq.s32.totalorder %s29, 0
      %p216 = por %p214, %p215
      %p217 = scmp.ne.s32.totalorder %s206, %s209
      %p218 = scmp.eq.s32.totalorder %s34, 1
      %p219 = por %p217, %p218
      %p220 = scmp.ne.s32.totalorder %s209, %s210
      %p221 = scmp.eq.s32.totalorder %s34, 0
      %p222 = por %p220, %p221
      %p223 = scmp.ne.s32.totalorder %s209, %s210
      %p224 = scmp.eq.s32.totalorder %s35, 1
      %p225 = por %p223, %p224
      %p227 = scmp.ne.s32.totalorder %s210, %s226
      %p228 = scmp.eq.s32.totalorder %s35, 0
      %p229 = por %p227, %p228
      %s230 = ssub.s32 %s29, %s36
      %p231 = scmp.eq.s32.totalorder %s230, 0
      %s233 = sadd.s32 %s232, 1
      %s234 = scalar_select %p231, %s232, %s233
      %p237 = pneg %p231
      %p238 = scmp.eq.s32.totalorder %s29, 1
      %p239 = por %p237, %p238
      %p240 = scmp.ne.s32.totalorder %s232, %s235
      %p241 = scmp.eq.s32.totalorder %s29, 0
      %p242 = por %p240, %p241
      %p243 = scmp.ne.s32.totalorder %s232, %s235
      %p244 = scmp.eq.s32.totalorder %s34, 1
      %p245 = por %p243, %p244
      %p246 = scmp.ne.s32.totalorder %s235, %s236
      %p247 = scmp.eq.s32.totalorder %s34, 0
      %p248 = por %p246, %p247
      %p249 = scmp.ne.s32.totalorder %s235, %s236
      %p250 = scmp.eq.s32.totalorder %s35, 1
      %p251 = por %p249, %p250
      %p253 = scmp.ne.s32.totalorder %s236, %s252
      %p254 = scmp.eq.s32.totalorder %s35, 0
      %p255 = por %p253, %p254
      %p256 = scmp.le.s32.totalorder 1, %s29
      %p257 = scmp.lt.s32.totalorder %s29, 3
      %p258 = pnand %p256, %p257
      %p259 = pneg %p258
      // Predicated region
      $region9: #{tpu_custom_call.1} parent=5 // pred_check
        _
      $region10: #{tpu_custom_call.1} parent=5 // pred_check_branch
        %261 = sbr.rel (%p258) target = $region12
      $region11: #{tpu_custom_call.1} parent=5 // pred_region
        %s262 = ssub.s32 %s29, 1
        // Predicated region
        $region13: #{tpu_custom_call.1} parent=11 // pred_check
          %p263 = pneg %p128
        $region14: #{tpu_custom_call.1} parent=11 // pred_check_branch
          %265 = sbr.rel (%p263) target = $region16
        $region15: #{tpu_custom_call.1} parent=11 // pred_region
          %267 = vsyncadd [#allocation9], 0
          %s269 = sshll.u32 %s3, 4
          %s270 = int_to_ptr.hbm [resolvable:$true] %s269
          %s271 = sshll.u32 [#allocation8], 4
          %s272 = int_to_ptr.vmem [resolvable:$true] %s271
          %274 = dma.hbm_to_vmem [thread:$0]  %s270, 128, %s272, [#allocation9]
        $region16: #{tpu_custom_call.1} parent=11 // pred_fallthru
          _
        // Predicated region
        $region17: #{tpu_custom_call.1} parent=11 // pred_check
          %p275 = pneg %p149
        $region18: #{tpu_custom_call.1} parent=11 // pred_check_branch
          %277 = sbr.rel (%p275) target = $region20
        $region19: #{tpu_custom_call.1} parent=11 // pred_region
          %279 = vsyncadd [#allocation9], 0
          %s280 = sshll.u32 %s4, 4
          %s281 = int_to_ptr.hbm [resolvable:$true] %s280
          %s282 = sshll.u32 [#allocation10], 4
          %s283 = int_to_ptr.vmem [resolvable:$true] %s282
          %288 = dma.hbm_to_vmem [thread:$0]  %s281, 512, %s283, [#allocation9], 128, 128, 8
        $region20: #{tpu_custom_call.1} parent=11 // pred_fallthru
          _
        // Predicated region
        $region21: #{tpu_custom_call.1} parent=11 // pred_check
          %p289 = pneg %p170
        $region22: #{tpu_custom_call.1} parent=11 // pred_check_branch
          %291 = sbr.rel (%p289) target = $region24
        $region23: #{tpu_custom_call.1} parent=11 // pred_region
          %293 = vsyncadd [#allocation12], 0
          %s294 = sshll.u32 %s5, 4
          %s295 = int_to_ptr.hbm [resolvable:$true] %s294
          %s296 = sshll.u32 [#allocation11], 4
          %s297 = int_to_ptr.vmem [resolvable:$true] %s296
          %302 = dma.hbm_to_vmem [thread:$0]  %s295, 512, %s297, [#allocation12], 128, 128, 8
        $region24: #{tpu_custom_call.1} parent=11 // pred_fallthru
          _
      $region12: #{tpu_custom_call.1} parent=5 // pred_fallthru
        _
      %p303 = scmp.lt.s32.totalorder %s29, 2
      // Predicated region
      $region25: #{tpu_custom_call.1} parent=5 // pred_check
        %p304 = pneg %p303
      $region26: #{tpu_custom_call.1} parent=5 // pred_check_branch
        %306 = sbr.rel (%p304) target = $region28
      $region27: #{tpu_custom_call.1} parent=5 // pred_region
        // Predicated region
        $region29: #{tpu_custom_call.1} parent=27 // pred_check
          %p307 = pneg %p49
        $region30: #{tpu_custom_call.1} parent=27 // pred_check_branch
          %309 = sbr.rel (%p307) target = $region32
        $region31: #{tpu_custom_call.1} parent=27 // pred_region
          %s310 = sand.u32 %s29, 1
          %s311 = scalar_lea.sflag [#allocation3], %s310
          %s312 = sand.u32 %s39, 1
          %s313 = smul.addr %s312, 8
          %s314 = scalar_lea.vmem [#allocation2], %s313
          %316 = vsyncadd %s311, 0
          %s317 = smul.addr %s29, 8
          %s318 = scalar_lea.hbm %s0, %s317
          %s320 = sshll.u32 %s318, 4
          %s321 = int_to_ptr.hbm [resolvable:$true] %s320
          %s322 = sshll.u32 %s314, 4
          %s323 = int_to_ptr.vmem [resolvable:$true] %s322
          %325 = dma.hbm_to_vmem [thread:$0]  %s321, 128, %s323, %s311
        $region32: #{tpu_custom_call.1} parent=27 // pred_fallthru
          _
        // Predicated region
        $region33: #{tpu_custom_call.1} parent=27 // pred_check
          %p326 = pneg %p75
        $region34: #{tpu_custom_call.1} parent=27 // pred_check_branch
          %328 = sbr.rel (%p326) target = $region36
        $region35: #{tpu_custom_call.1} parent=27 // pred_region
          %s329 = sand.u32 %s29, 1
          %s330 = scalar_lea.sflag [#allocation6], %s329
          %s331 = sand.u32 %s65, 1
          %s332 = smul.addr %s331, 8
          %s333 = scalar_lea.vmem [#allocation5], %s332
          %335 = vsyncadd %s330, 0
          %s336 = smul.addr %s29, 8
          %s337 = scalar_lea.hbm %s1, %s336
          %s339 = sshll.u32 %s337, 4
          %s340 = int_to_ptr.hbm [resolvable:$true] %s339
          %s341 = sshll.u32 %s333, 4
          %s342 = int_to_ptr.vmem [resolvable:$true] %s341
          %344 = dma.hbm_to_vmem [thread:$0]  %s340, 128, %s342, %s330
        $region36: #{tpu_custom_call.1} parent=27 // pred_fallthru
          _
        // Predicated region
        $region37: #{tpu_custom_call.1} parent=27 // pred_check
          %p345 = pneg %p101
        $region38: #{tpu_custom_call.1} parent=27 // pred_check_branch
          %347 = sbr.rel (%p345) target = $region40
        $region39: #{tpu_custom_call.1} parent=27 // pred_region
          %s348 = sand.u32 %s29, 1
          %s349 = scalar_lea.sflag [#allocation6], %s348
          %s350 = sand.u32 %s91, 1
          %s351 = smul.addr %s350, 8
          %s352 = scalar_lea.vmem [#allocation7], %s351
          %354 = vsyncadd %s349, 0
          %s355 = smul.addr %s29, 8
          %s356 = scalar_lea.hbm %s2, %s355
          %s358 = sshll.u32 %s356, 4
          %s359 = int_to_ptr.hbm [resolvable:$true] %s358
          %s360 = sshll.u32 %s352, 4
          %s361 = int_to_ptr.vmem [resolvable:$true] %s360
          %363 = dma.hbm_to_vmem [thread:$0]  %s359, 128, %s361, %s349
        $region40: #{tpu_custom_call.1} parent=27 // pred_fallthru
          _
        // Predicated region
        $region41: #{tpu_custom_call.1} parent=27 // pred_check
          %p364 = pneg %p190
        $region42: #{tpu_custom_call.1} parent=27 // pred_check_branch
          %366 = sbr.rel (%p364) target = $region44
        $region43: #{tpu_custom_call.1} parent=27 // pred_region
          %s367 = sand.u32 %s29, 1
          %s368 = scalar_lea.sflag [#allocation3], %s367
          %s369 = sand.u32 %s180, 1
          %s370 = smul.addr %s369, 8
          %s371 = scalar_lea.vmem [#allocation13], %s370
          %373 = vsyncadd %s368, 0
          %s374 = smul.addr %s29, 8
          %s375 = scalar_lea.hbm %s6, %s374
          %s377 = sshll.u32 %s375, 4
          %s378 = int_to_ptr.hbm [resolvable:$true] %s377
          %s379 = sshll.u32 %s371, 4
          %s380 = int_to_ptr.vmem [resolvable:$true] %s379
          %382 = dma.hbm_to_vmem [thread:$0]  %s378, 128, %s380, %s368
        $region44: #{tpu_custom_call.1} parent=27 // pred_fallthru
          _
      $region28: #{tpu_custom_call.1} parent=5 // pred_fallthru
        _
      %p383 = scmp.le.s32.totalorder 1, %s29
      %p384 = scmp.lt.s32.totalorder %s29, 3
      %p385 = pnand %p383, %p384
      %p386 = pneg %p385
      // Predicated region
      $region45: #{tpu_custom_call.1} parent=5 // pred_check
        _
      $region46: #{tpu_custom_call.1} parent=5 // pred_check_branch
        %388 = sbr.rel (%p385) target = $region48
      $region47: #{tpu_custom_call.1} parent=5 // pred_region
        %s389 = ssub.s32 %s29, 1
        %s390 = sand.u32 %s34, 1
        %s391 = scalar_lea.sflag [#allocation3], %s390
        %s392 = sand.u32 %s42, 1
        %s393 = smul.addr %s392, 8
        %s394 = scalar_lea.vmem [#allocation2], %s393
        // Predicated region
        $region49: #{tpu_custom_call.1} parent=47 // pred_check
          %p395 = pneg %p55
        $region50: #{tpu_custom_call.1} parent=47 // pred_check_branch
          %397 = sbr.rel (%p395) target = $region52
        $region51: #{tpu_custom_call.1} parent=47 // pred_region
          %399 = dma.done %s391, 128
        $region52: #{tpu_custom_call.1} parent=47 // pred_fallthru
          _
        %s400 = sand.u32 %s34, 1
        %s401 = scalar_lea.sflag [#allocation6], %s400
        %s402 = sand.u32 %s68, 1
        %s403 = smul.addr %s402, 8
        %s404 = scalar_lea.vmem [#allocation5], %s403
        // Predicated region
        $region53: #{tpu_custom_call.1} parent=47 // pred_check
          %p405 = pneg %p81
        $region54: #{tpu_custom_call.1} parent=47 // pred_check_branch
          %407 = sbr.rel (%p405) target = $region56
        $region55: #{tpu_custom_call.1} parent=47 // pred_region
          %409 = dma.done %s401, 128
        $region56: #{tpu_custom_call.1} parent=47 // pred_fallthru
          _
        %s410 = sand.u32 %s34, 1
        %s411 = scalar_lea.sflag [#allocation6], %s410
        %s412 = sand.u32 %s94, 1
        %s413 = smul.addr %s412, 8
        %s414 = scalar_lea.vmem [#allocation7], %s413
        // Predicated region
        $region57: #{tpu_custom_call.1} parent=47 // pred_check
          %p415 = pneg %p107
        $region58: #{tpu_custom_call.1} parent=47 // pred_check_branch
          %417 = sbr.rel (%p415) target = $region60
        $region59: #{tpu_custom_call.1} parent=47 // pred_region
          %419 = dma.done %s411, 128
        $region60: #{tpu_custom_call.1} parent=47 // pred_fallthru
          _
        // Predicated region
        $region61: #{tpu_custom_call.1} parent=47 // pred_check
          %p420 = pneg %p128
        $region62: #{tpu_custom_call.1} parent=47 // pred_check_branch
          %422 = sbr.rel (%p420) target = $region64
        $region63: #{tpu_custom_call.1} parent=47 // pred_region
          %424 = dma.done [#allocation9], 128
        $region64: #{tpu_custom_call.1} parent=47 // pred_fallthru
          _
        // Predicated region
        $region65: #{tpu_custom_call.1} parent=47 // pred_check
          %p425 = pneg %p149
        $region66: #{tpu_custom_call.1} parent=47 // pred_check_branch
          %427 = sbr.rel (%p425) target = $region68
        $region67: #{tpu_custom_call.1} parent=47 // pred_region
          %429 = dma.done [#allocation9], 512
        $region68: #{tpu_custom_call.1} parent=47 // pred_fallthru
          _
        // Predicated region
        $region69: #{tpu_custom_call.1} parent=47 // pred_check
          %p430 = pneg %p170
        $region70: #{tpu_custom_call.1} parent=47 // pred_check_branch
          %432 = sbr.rel (%p430) target = $region72
        $region71: #{tpu_custom_call.1} parent=47 // pred_region
          %434 = dma.done [#allocation12], 512
        $region72: #{tpu_custom_call.1} parent=47 // pred_fallthru
          _
        %s435 = sand.u32 %s34, 1
        %s436 = scalar_lea.sflag [#allocation3], %s435
        %s437 = sand.u32 %s183, 1
        %s438 = smul.addr %s437, 8
        %s439 = scalar_lea.vmem [#allocation13], %s438
        // Predicated region
        $region73: #{tpu_custom_call.1} parent=47 // pred_check
          %p440 = pneg %p196
        $region74: #{tpu_custom_call.1} parent=47 // pred_check_branch
          %442 = sbr.rel (%p440) target = $region76
        $region75: #{tpu_custom_call.1} parent=47 // pred_region
          %444 = dma.done %s436, 128
        $region76: #{tpu_custom_call.1} parent=47 // pred_fallthru
          _
        %s445 = sand.u32 %s34, 1
        %s446 = scalar_lea.sflag [#allocation3], %s445
        %s447 = sand.u32 %s42, 1
        %s448 = smul.addr %s447, 8
        %s449 = scalar_lea.vmem [#allocation2], %s448
        %p450 = pneg %p55
        %p451 = pneg %p52
        %s452 = sand.u32 %s34, 1
        %s453 = scalar_lea.sflag [#allocation6], %s452
        %s454 = sand.u32 %s68, 1
        %s455 = smul.addr %s454, 8
        %s456 = scalar_lea.vmem [#allocation5], %s455
        %p457 = pneg %p81
        %p458 = pneg %p78
        %s459 = sand.u32 %s34, 1
        %s460 = scalar_lea.sflag [#allocation6], %s459
        %s461 = sand.u32 %s94, 1
        %s462 = smul.addr %s461, 8
        %s463 = scalar_lea.vmem [#allocation7], %s462
        %p464 = pneg %p107
        %p465 = pneg %p104
        %p466 = pneg %p128
        %p467 = pneg %p125
        %p468 = pneg %p149
        %p469 = pneg %p146
        %p470 = pneg %p170
        %p471 = pneg %p167
        %s472 = sand.u32 %s34, 1
        %s473 = scalar_lea.sflag [#allocation3], %s472
        %s474 = sand.u32 %s183, 1
        %s475 = smul.addr %s474, 8
        %s476 = scalar_lea.vmem [#allocation13], %s475
        %p477 = pneg %p196
        %p478 = pneg %p193
        %p479 = pneg %p222
        %p480 = pneg %p219
        %s481 = sand.u32 %s209, 1
        %s482 = scalar_lea.sflag [#allocation4], %s481
        %s483 = sand.u32 %s209, 1
        %s484 = smul.addr %s483, 8
        %s485 = scalar_lea.vmem [#allocation14], %s484
        %p486 = pneg %p248
        %p487 = pneg %p245
        %s488 = sand.u32 %s235, 1
        %s489 = scalar_lea.sflag [#allocation16], %s488
        %s490 = sand.u32 %s235, 1
        %s491 = smul.addr %s490, 32
        %s492 = scalar_lea.vmem [#allocation15], %s491
        %v493 = vld [vmem:[#allocation8] sm:$0x3f]
        %v494 = vld [vmem:[%s394] sm:$0xff]
        %vm495 = vcmask 261120
        %v496 = vsel %vm495, %v494, 0.0
        %497 = vadd.xlane.f32.xlu0 %v496
        %v498 = vpop.xlane.xlu0 %497
        %v499 = vrcp.pop 32.0
        %v500 = vmul.f32 32.0, %v499
        %v501 = vsub.f32 1.0, %v500
        %v502 = vmul.f32 %v499, %v501
        %v503 = vadd.f32 %v499, %v502
        %vm504 = vweird.f32 %v499
        %v505 = vsel %vm504, %v499, %v503
        %v506 = vmul.f32 %v498, %v505
        %v507 = vsub.f32 %v494, %v506
        %v508 = vmul.f32 %v507, %v507
        %v509 = vsel %vm495, %v508, 0.0
        %510 = vadd.xlane.f32.xlu0 %v509
        %v511 = vpop.xlane.xlu0 %510
        %v512 = vmul.f32 %v511, %v505
        %v513 = vadd.f32 %v512, 1e-05
        %v514 = vrsqrt.pop %v513
        %v515 = vmul.f32 %v514, %v513
        %v516 = vmul.f32 %v515, %v514
        %v517 = vmul.f32 0.5, %v516
        %v518 = vsub.f32 1.5, %v517
        %v519 = vmul.f32 %v514, %v518
        %vm520 = vweird.f32 %v513
        %vm521 = vweird.f32 %v514
        %vm522 = vmor %vm520, %vm521
        %v523 = vsel %vm522, %v514, %v519
        %v524 = vmul.f32 %v507, %v523
        %v525 = vperm.slane %v493, 0
        %v526 = vmul.f32 %v524, %v525
        %v527 = vperm.slane %v493, 1
        %v528 = vadd.f32 %v526, %v527
        %v529 = vld [vmem:[%s404] sm:$0xff]
        %v530 = vsel %vm495, %v529, 0.0
        %531 = vadd.xlane.f32.xlu0 %v530
        %v532 = vpop.xlane.xlu0 %531
        %v533 = vmul.f32 %v532, %v505
        %v534 = vsub.f32 %v529, %v533
        %v535 = vmul.f32 %v534, %v534
        %v536 = vsel %vm495, %v535, 0.0
        %537 = vadd.xlane.f32.xlu0 %v536
        %v538 = vpop.xlane.xlu0 %537
        %v539 = vmul.f32 %v538, %v505
        %v540 = vadd.f32 %v539, 1e-05
        %v541 = vrsqrt.pop %v540
        %v542 = vmul.f32 %v541, %v540
        %v543 = vmul.f32 %v542, %v541
        %v544 = vmul.f32 0.5, %v543
        %v545 = vsub.f32 1.5, %v544
        %v546 = vmul.f32 %v541, %v545
        %vm547 = vweird.f32 %v540
        %vm548 = vweird.f32 %v541
        %vm549 = vmor %vm547, %vm548
        %v550 = vsel %vm549, %v541, %v546
        %v551 = vmul.f32 %v534, %v550
        %v552 = vperm.slane %v493, 2
        %v553 = vmul.f32 %v551, %v552
        %v554 = vperm.slane %v493, 3
        %v555 = vadd.f32 %v553, %v554
        %v556 = vld [vmem:[%s414] sm:$0xff]
        %v557 = vsel %vm495, %v556, 0.0
        %558 = vadd.xlane.f32.xlu0 %v557
        %v559 = vpop.xlane.xlu0 %558
        %v560 = vmul.f32 %v559, %v505
        %v561 = vsub.f32 %v556, %v560
        %v562 = vmul.f32 %v561, %v561
        %v563 = vsel %vm495, %v562, 0.0
        %564 = vadd.xlane.f32.xlu0 %v563
        %v565 = vpop.xlane.xlu0 %564
        %v566 = vmul.f32 %v565, %v505
        %v567 = vadd.f32 %v566, 1e-05
        %v568 = vrsqrt.pop %v567
        %v569 = vmul.f32 %v568, %v567
        %v570 = vmul.f32 %v569, %v568
        %v571 = vmul.f32 0.5, %v570
        %v572 = vsub.f32 1.5, %v571
        %v573 = vmul.f32 %v568, %v572
        %vm574 = vweird.f32 %v567
        %vm575 = vweird.f32 %v568
        %vm576 = vmor %vm574, %vm575
        %v577 = vsel %vm576, %v568, %v573
        %v578 = vmul.f32 %v561, %v577
        %v579 = vperm.slane %v493, 4
        %v580 = vmul.f32 %v578, %v579
        %v581 = vperm.slane %v493, 5
        %v582 = vadd.f32 %v580, %v581
        %v583 = vld [vmem:[#allocation10] sm:$0xff]
        %v584 = vld [vmem:[#allocation10 + $0x8] sm:$0xff]
        %v585 = vld [vmem:[#allocation10 + $0x10] sm:$0xff]
        %v586 = vld [vmem:[#allocation10 + $0x18] sm:$0xff]
        %v588 = vsel %vm495, %v528, 0
        %590 = vmatpush.msra.mxu0 0.0
        %591 = vmatpush.msra.mxu0 0.0
        %592 = vmatpush.msra.mxu0 0.0
        %593 = vmatpush.msra.mxu0 0.0
        %594 = vmatpush.msra.mxu0 0.0
        %595 = vmatpush.msra.mxu0 0.0
        %596 = vmatpush.msra.mxu0 0.0
        %597 = vmatpush.msra.mxu0 0.0
        %598 = vmatpush.msra.mxu0 0.0
        %599 = vmatpush.msra.mxu0 0.0
        %600 = vmatpush.msra.mxu0 0.0
        %601 = vmatpush.msra.mxu0 0.0
        %602 = vmatpush.msra.mxu0 %v586
        %603 = vmatpush.msra.mxu0 %v585
        %604 = vmatpush.msra.mxu0 %v584
        %605 = vmatpush.msra.mxu0 %v583
        %606 = vmatmul.f32.gmra.mxu0 %v588
        %v607 = vpop.f32.mrf.mxu0
        %v608 = vadd.f32 0.0, %v607
        %609 = vdwg.mxu0
        %614 = vrot.lane.b32.xlu0 %v583, 96
        %v615 = vpop.permute.xlu0 %614
        %616 = vrot.lane.b32.xlu0 %v584, 96
        %v617 = vpop.permute.xlu0 %616
        %618 = vrot.lane.b32.xlu0 %v585, 96
        %v619 = vpop.permute.xlu0 %618
        %620 = vrot.lane.b32.xlu0 %v586, 96
        %v621 = vpop.permute.xlu0 %620
        %v627 = vsel %vm495, %v555, 0
        %629 = vmatpush.msra.mxu0 0.0
        %630 = vmatpush.msra.mxu0 0.0
        %631 = vmatpush.msra.mxu0 0.0
        %632 = vmatpush.msra.mxu0 0.0
        %633 = vmatpush.msra.mxu0 0.0
        %634 = vmatpush.msra.mxu0 0.0
        %635 = vmatpush.msra.mxu0 0.0
        %636 = vmatpush.msra.mxu0 0.0
        %637 = vmatpush.msra.mxu0 0.0
        %638 = vmatpush.msra.mxu0 0.0
        %639 = vmatpush.msra.mxu0 0.0
        %640 = vmatpush.msra.mxu0 0.0
        %641 = vmatpush.msra.mxu0 %v621
        %642 = vmatpush.msra.mxu0 %v619
        %643 = vmatpush.msra.mxu0 %v617
        %644 = vmatpush.msra.mxu0 %v615
        %645 = vmatmul.f32.gmra.mxu0 %v627
        %v646 = vpop.f32.mrf.mxu0
        %v647 = vadd.f32 0.0, %v646
        %648 = vdwg.mxu0
        %649 = vrot.lane.b32.xlu0 %v583, 64
        %v650 = vpop.permute.xlu0 %649
        %651 = vrot.lane.b32.xlu0 %v584, 64
        %v652 = vpop.permute.xlu0 %651
        %653 = vrot.lane.b32.xlu0 %v585, 64
        %v654 = vpop.permute.xlu0 %653
        %655 = vrot.lane.b32.xlu0 %v586, 64
        %v656 = vpop.permute.xlu0 %655
        %v662 = vsel %vm495, %v582, 0
        %664 = vmatpush.msra.mxu0 0.0
        %665 = vmatpush.msra.mxu0 0.0
        %666 = vmatpush.msra.mxu0 0.0
        %667 = vmatpush.msra.mxu0 0.0
        %668 = vmatpush.msra.mxu0 0.0
        %669 = vmatpush.msra.mxu0 0.0
        %670 = vmatpush.msra.mxu0 0.0
        %671 = vmatpush.msra.mxu0 0.0
        %672 = vmatpush.msra.mxu0 0.0
        %673 = vmatpush.msra.mxu0 0.0
        %674 = vmatpush.msra.mxu0 0.0
        %675 = vmatpush.msra.mxu0 0.0
        %676 = vmatpush.msra.mxu0 %v656
        %677 = vmatpush.msra.mxu0 %v654
        %678 = vmatpush.msra.mxu0 %v652
        %679 = vmatpush.msra.mxu0 %v650
        %680 = vmatmul.f32.gmra.mxu0 %v662
        %v681 = vpop.f32.mrf.mxu0
        %v682 = vadd.f32 0.0, %v681
        %683 = vdwg.mxu0
        %v684 = vld [vmem:[%s439] sm:$0xff]
        %vm685 = vcmask 64512
        %v687 = vsel %vm685, %v608, 0
        %v690 = vsel %vm685, %v647, 0
        %692 = vmatpush.xpose.msra.mxu0 0.0
        %693 = vmatpush.xpose.msra.mxu0 0.0
        %694 = vmatpush.xpose.msra.mxu0 0.0
        %695 = vmatpush.xpose.msra.mxu0 0.0
        %696 = vmatpush.xpose.msra.mxu0 0.0
        %697 = vmatpush.xpose.msra.mxu0 0.0
        %698 = vmatpush.xpose.msra.mxu0 0.0
        %699 = vmatpush.xpose.msra.mxu0 0.0
        %700 = vmatpush.xpose.msra.mxu0 0.0
        %701 = vmatpush.xpose.msra.mxu0 0.0
        %702 = vmatpush.xpose.msra.mxu0 0.0
        %703 = vmatpush.xpose.msra.mxu0 0.0
        %704 = vmatpush.xpose.msra.mxu0 0.0
        %705 = vmatpush.xpose.msra.mxu0 0.0
        %706 = vmatpush.xpose.msra.mxu0 0.0
        %707 = vmatpush.xpose.msra.mxu0 %v690
        %708 = vmatmul.f32.gmra.mxu0 %v687
        %v709 = vpop.f32.mrf.mxu0
        %v710 = vadd.f32 0.0, %v709
        %711 = vdwg.mxu0
        %v712 = vmul.f32 %v710, %v684
        %v713 = vsel %vm685, %v712, -inf
        %714 = vmax.xlane.f32.xlu0 %v713
        %v715 = vpop.xlane.xlu0 %714
        %v716 = vsub.f32 %v712, %v715
        %v717 = vmul.f32 %v716, 1.442695
        %v718 = vpow.pop %v717
        %v719 = vmul.f32 %v718, %v684
        %v720 = vsel %vm685, %v719, 0.0
        %721 = vadd.xlane.f32.xlu0 %v720
        %v722 = vpop.xlane.xlu0 %721
        %v723 = vadd.f32 %v722, 1e-13
        %v724 = vrcp.pop %v723
        %v725 = vmul.f32 %v723, %v724
        %v726 = vsub.f32 1.0, %v725
        %v727 = vmul.f32 %v724, %v726
        %v728 = vadd.f32 %v724, %v727
        %vm729 = vweird.f32 %v723
        %vm730 = vweird.f32 %v724
        %vm731 = vmor %vm729, %vm730
        %v732 = vsel %vm731, %v724, %v728
        %v733 = vand.u32 2147483647, %v723
        %vm734 = vcmp.eq.f32.partialorder %v733, 8.507059e+37
        %v735 = vand.u32 %v723, 2147483648
        %v736 = vor.u32 1.1754944e-38, %v735
        %v737 = vsel %vm734, %v736, %v732
        %v738 = vmul.f32 %v719, %v737
        %739 = vst.msk [vmem:[%s492] sm:$0xff] %vm685, %v738
        %v741 = vsel %vm685, %v738, 0
        %743 = vmatpush.msra.mxu0 0.0
        %744 = vmatpush.msra.mxu0 0.0
        %745 = vmatpush.msra.mxu0 0.0
        %746 = vmatpush.msra.mxu0 0.0
        %747 = vmatpush.msra.mxu0 0.0
        %748 = vmatpush.msra.mxu0 0.0
        %749 = vmatpush.msra.mxu0 0.0
        %750 = vmatpush.msra.mxu0 0.0
        %751 = vmatpush.msra.mxu0 0.0
        %752 = vmatpush.msra.mxu0 0.0
        %753 = vmatpush.msra.mxu0 0.0
        %754 = vmatpush.msra.mxu0 0.0
        %755 = vmatpush.msra.mxu0 0.0
        %756 = vmatpush.msra.mxu0 0.0
        %757 = vmatpush.msra.mxu0 0.0
        %758 = vmatpush.msra.mxu0 %v682
        %759 = vmatmul.f32.gmra.mxu0 %v741
        %v760 = vpop.f32.mrf.mxu0
        %v761 = vadd.f32 0.0, %v760
        %762 = vdwg.mxu0
        %763 = vrot.lane.b32.xlu0 %v608, 120
        %v764 = vpop.permute.xlu0 %763
        %765 = vrot.lane.b32.xlu0 %v647, 120
        %v766 = vpop.permute.xlu0 %765
        %v767 = vsel %vm685, %v764, 0
        %v769 = vsel %vm685, %v766, 0
        %771 = vmatpush.xpose.msra.mxu0 0.0
        %772 = vmatpush.xpose.msra.mxu0 0.0
        %773 = vmatpush.xpose.msra.mxu0 0.0
        %774 = vmatpush.xpose.msra.mxu0 0.0
        %775 = vmatpush.xpose.msra.mxu0 0.0
        %776 = vmatpush.xpose.msra.mxu0 0.0
        %777 = vmatpush.xpose.msra.mxu0 0.0
        %778 = vmatpush.xpose.msra.mxu0 0.0
        %779 = vmatpush.xpose.msra.mxu0 0.0
        %780 = vmatpush.xpose.msra.mxu0 0.0
        %781 = vmatpush.xpose.msra.mxu0 0.0
        %782 = vmatpush.xpose.msra.mxu0 0.0
        %783 = vmatpush.xpose.msra.mxu0 0.0
        %784 = vmatpush.xpose.msra.mxu0 0.0
        %785 = vmatpush.xpose.msra.mxu0 0.0
        %786 = vmatpush.xpose.msra.mxu0 %v769
        %787 = vmatmul.f32.gmra.mxu0 %v767
        %v788 = vpop.f32.mrf.mxu0
        %v789 = vadd.f32 0.0, %v788
        %790 = vdwg.mxu0
        %v791 = vmul.f32 %v789, %v684
        %v792 = vsel %vm685, %v791, -inf
        %793 = vmax.xlane.f32.xlu0 %v792
        %v794 = vpop.xlane.xlu0 %793
        %v795 = vsub.f32 %v791, %v794
        %v796 = vmul.f32 %v795, 1.442695
        %v797 = vpow.pop %v796
        %v798 = vmul.f32 %v797, %v684
        %v799 = vsel %vm685, %v798, 0.0
        %800 = vadd.xlane.f32.xlu0 %v799
        %v801 = vpop.xlane.xlu0 %800
        %v802 = vadd.f32 %v801, 1e-13
        %v803 = vrcp.pop %v802
        %v804 = vmul.f32 %v802, %v803
        %v805 = vsub.f32 1.0, %v804
        %v806 = vmul.f32 %v803, %v805
        %v807 = vadd.f32 %v803, %v806
        %vm808 = vweird.f32 %v802
        %vm809 = vweird.f32 %v803
        %vm810 = vmor %vm808, %vm809
        %v811 = vsel %vm810, %v803, %v807
        %v812 = vand.u32 2147483647, %v802
        %vm813 = vcmp.eq.f32.partialorder %v812, 8.507059e+37
        %v814 = vand.u32 %v802, 2147483648
        %v815 = vor.u32 1.1754944e-38, %v814
        %v816 = vsel %vm813, %v815, %v811
        %v817 = vmul.f32 %v798, %v816
        %s818 = scalar_lea.vmem %s492, 8 [#allocation15]
        %819 = vst.msk [vmem:[%s818] sm:$0xff] %vm685, %v817
        %821 = vrot.lane.b32.xlu0 %v682, 120
        %v822 = vpop.permute.xlu0 %821
        %v825 = vsel %vm685, %v817, 0
        %827 = vmatpush.msra.mxu0 0.0
        %828 = vmatpush.msra.mxu0 0.0
        %829 = vmatpush.msra.mxu0 0.0
        %830 = vmatpush.msra.mxu0 0.0
        %831 = vmatpush.msra.mxu0 0.0
        %832 = vmatpush.msra.mxu0 0.0
        %833 = vmatpush.msra.mxu0 0.0
        %834 = vmatpush.msra.mxu0 0.0
        %835 = vmatpush.msra.mxu0 0.0
        %836 = vmatpush.msra.mxu0 0.0
        %837 = vmatpush.msra.mxu0 0.0
        %838 = vmatpush.msra.mxu0 0.0
        %839 = vmatpush.msra.mxu0 0.0
        %840 = vmatpush.msra.mxu0 0.0
        %841 = vmatpush.msra.mxu0 0.0
        %842 = vmatpush.msra.mxu0 %v822
        %843 = vmatmul.f32.gmra.mxu0 %v825
        %v844 = vpop.f32.mrf.mxu0
        %v845 = vadd.f32 0.0, %v844
        %846 = vdwg.mxu0
        %847 = vrot.lane.b32.xlu0 %v608, 112
        %v848 = vpop.permute.xlu0 %847
        %849 = vrot.lane.b32.xlu0 %v647, 112
        %v850 = vpop.permute.xlu0 %849
        %v851 = vsel %vm685, %v848, 0
        %v853 = vsel %vm685, %v850, 0
        %855 = vmatpush.xpose.msra.mxu0 0.0
        %856 = vmatpush.xpose.msra.mxu0 0.0
        %857 = vmatpush.xpose.msra.mxu0 0.0
        %858 = vmatpush.xpose.msra.mxu0 0.0
        %859 = vmatpush.xpose.msra.mxu0 0.0
        %860 = vmatpush.xpose.msra.mxu0 0.0
        %861 = vmatpush.xpose.msra.mxu0 0.0
        %862 = vmatpush.xpose.msra.mxu0 0.0
        %863 = vmatpush.xpose.msra.mxu0 0.0
        %864 = vmatpush.xpose.msra.mxu0 0.0
        %865 = vmatpush.xpose.msra.mxu0 0.0
        %866 = vmatpush.xpose.msra.mxu0 0.0
        %867 = vmatpush.xpose.msra.mxu0 0.0
        %868 = vmatpush.xpose.msra.mxu0 0.0
        %869 = vmatpush.xpose.msra.mxu0 0.0
        %870 = vmatpush.xpose.msra.mxu0 %v853
        %871 = vmatmul.f32.gmra.mxu0 %v851
        %v872 = vpop.f32.mrf.mxu0
        %v873 = vadd.f32 0.0, %v872
        %874 = vdwg.mxu0
        %v875 = vmul.f32 %v873, %v684
        %v876 = vsel %vm685, %v875, -inf
        %877 = vmax.xlane.f32.xlu0 %v876
        %v878 = vpop.xlane.xlu0 %877
        %v879 = vsub.f32 %v875, %v878
        %v880 = vmul.f32 %v879, 1.442695
        %v881 = vpow.pop %v880
        %v882 = vmul.f32 %v881, %v684
        %v883 = vsel %vm685, %v882, 0.0
        %884 = vadd.xlane.f32.xlu0 %v883
        %v885 = vpop.xlane.xlu0 %884
        %v886 = vadd.f32 %v885, 1e-13
        %v887 = vrcp.pop %v886
        %v888 = vmul.f32 %v886, %v887
        %v889 = vsub.f32 1.0, %v888
        %v890 = vmul.f32 %v887, %v889
        %v891 = vadd.f32 %v887, %v890
        %vm892 = vweird.f32 %v886
        %vm893 = vweird.f32 %v887
        %vm894 = vmor %vm892, %vm893
        %v895 = vsel %vm894, %v887, %v891
        %v896 = vand.u32 2147483647, %v886
        %vm897 = vcmp.eq.f32.partialorder %v896, 8.507059e+37
        %v898 = vand.u32 %v886, 2147483648
        %v899 = vor.u32 1.1754944e-38, %v898
        %v900 = vsel %vm897, %v899, %v895
        %v901 = vmul.f32 %v882, %v900
        %s902 = scalar_lea.vmem %s492, 16 [#allocation15]
        %903 = vst.msk [vmem:[%s902] sm:$0xff] %vm685, %v901
        %904 = vrot.lane.b32.xlu0 %v682, 112
        %v905 = vpop.permute.xlu0 %904
        %v908 = vsel %vm685, %v901, 0
        %910 = vmatpush.msra.mxu0 0.0
        %911 = vmatpush.msra.mxu0 0.0
        %912 = vmatpush.msra.mxu0 0.0
        %913 = vmatpush.msra.mxu0 0.0
        %914 = vmatpush.msra.mxu0 0.0
        %915 = vmatpush.msra.mxu0 0.0
        %916 = vmatpush.msra.mxu0 0.0
        %917 = vmatpush.msra.mxu0 0.0
        %918 = vmatpush.msra.mxu0 0.0
        %919 = vmatpush.msra.mxu0 0.0
        %920 = vmatpush.msra.mxu0 0.0
        %921 = vmatpush.msra.mxu0 0.0
        %922 = vmatpush.msra.mxu0 0.0
        %923 = vmatpush.msra.mxu0 0.0
        %924 = vmatpush.msra.mxu0 0.0
        %925 = vmatpush.msra.mxu0 %v905
        %926 = vmatmul.f32.gmra.mxu0 %v908
        %v927 = vpop.f32.mrf.mxu0
        %v928 = vadd.f32 0.0, %v927
        %929 = vdwg.mxu0
        %930 = vrot.lane.b32.xlu0 %v608, 104
        %v931 = vpop.permute.xlu0 %930
        %932 = vrot.lane.b32.xlu0 %v647, 104
        %v933 = vpop.permute.xlu0 %932
        %v934 = vsel %vm685, %v931, 0
        %v936 = vsel %vm685, %v933, 0
        %938 = vmatpush.xpose.msra.mxu0 0.0
        %939 = vmatpush.xpose.msra.mxu0 0.0
        %940 = vmatpush.xpose.msra.mxu0 0.0
        %941 = vmatpush.xpose.msra.mxu0 0.0
        %942 = vmatpush.xpose.msra.mxu0 0.0
        %943 = vmatpush.xpose.msra.mxu0 0.0
        %944 = vmatpush.xpose.msra.mxu0 0.0
        %945 = vmatpush.xpose.msra.mxu0 0.0
        %946 = vmatpush.xpose.msra.mxu0 0.0
        %947 = vmatpush.xpose.msra.mxu0 0.0
        %948 = vmatpush.xpose.msra.mxu0 0.0
        %949 = vmatpush.xpose.msra.mxu0 0.0
        %950 = vmatpush.xpose.msra.mxu0 0.0
        %951 = vmatpush.xpose.msra.mxu0 0.0
        %952 = vmatpush.xpose.msra.mxu0 0.0
        %953 = vmatpush.xpose.msra.mxu0 %v936
        %954 = vmatmul.f32.gmra.mxu0 %v934
        %v955 = vpop.f32.mrf.mxu0
        %v956 = vadd.f32 0.0, %v955
        %957 = vdwg.mxu0
        %v958 = vmul.f32 %v956, %v684
        %v959 = vsel %vm685, %v958, -inf
        %960 = vmax.xlane.f32.xlu0 %v959
        %v961 = vpop.xlane.xlu0 %960
        %v962 = vsub.f32 %v958, %v961
        %v963 = vmul.f32 %v962, 1.442695
        %v964 = vpow.pop %v963
        %v965 = vmul.f32 %v964, %v684
        %v966 = vsel %vm685, %v965, 0.0
        %967 = vadd.xlane.f32.xlu0 %v966
        %v968 = vpop.xlane.xlu0 %967
        %v969 = vadd.f32 %v968, 1e-13
        %v970 = vrcp.pop %v969
        %v971 = vmul.f32 %v969, %v970
        %v972 = vsub.f32 1.0, %v971
        %v973 = vmul.f32 %v970, %v972
        %v974 = vadd.f32 %v970, %v973
        %vm975 = vweird.f32 %v969
        %vm976 = vweird.f32 %v970
        %vm977 = vmor %vm975, %vm976
        %v978 = vsel %vm977, %v970, %v974
        %v979 = vand.u32 2147483647, %v969
        %vm980 = vcmp.eq.f32.partialorder %v979, 8.507059e+37
        %v981 = vand.u32 %v969, 2147483648
        %v982 = vor.u32 1.1754944e-38, %v981
        %v983 = vsel %vm980, %v982, %v978
        %v984 = vmul.f32 %v965, %v983
        %s985 = scalar_lea.vmem %s492, 24 [#allocation15]
        %986 = vst.msk [vmem:[%s985] sm:$0xff] %vm685, %v984
        %987 = vrot.lane.b32.xlu0 %v682, 104
        %v988 = vpop.permute.xlu0 %987
        %v991 = vsel %vm685, %v984, 0
        %993 = vmatpush.msra.mxu0 0.0
        %994 = vmatpush.msra.mxu0 0.0
        %995 = vmatpush.msra.mxu0 0.0
        %996 = vmatpush.msra.mxu0 0.0
        %997 = vmatpush.msra.mxu0 0.0
        %998 = vmatpush.msra.mxu0 0.0
        %999 = vmatpush.msra.mxu0 0.0
        %1000 = vmatpush.msra.mxu0 0.0
        %1001 = vmatpush.msra.mxu0 0.0
        %1002 = vmatpush.msra.mxu0 0.0
        %1003 = vmatpush.msra.mxu0 0.0
        %1004 = vmatpush.msra.mxu0 0.0
        %1005 = vmatpush.msra.mxu0 0.0
        %1006 = vmatpush.msra.mxu0 0.0
        %1007 = vmatpush.msra.mxu0 0.0
        %1008 = vmatpush.msra.mxu0 %v988
        %1009 = vmatmul.f32.gmra.mxu0 %v991
        %v1010 = vpop.f32.mrf.mxu0
        %v1011 = vadd.f32 0.0, %v1010
        %1012 = vdwg.mxu0
        %1014 = vrot.lane.b32.xlu0 %v845, 8
        %v1015 = vpop.permute.xlu0 %1014
        %1018 = vrot.lane.b32.xlu0 %v928, 16
        %v1019 = vpop.permute.xlu0 %1018
        %1022 = vrot.lane.b32.xlu0 %v1011, 24
        %v1023 = vpop.permute.xlu0 %1022
        %v1025 = vsel %vm685, %v761, %v1015
        %vm1026 = vcmask 130048
        %v1027 = vsel %vm1026, %v1025, %v1019
        %vm1028 = vcmask 195584
        %v1029 = vsel %vm1028, %v1027, %v1023
        %v1030 = vld [vmem:[#allocation11] sm:$0xff]
        %v1031 = vld [vmem:[#allocation11 + $0x8] sm:$0xff]
        %v1032 = vld [vmem:[#allocation11 + $0x10] sm:$0xff]
        %v1033 = vld [vmem:[#allocation11 + $0x18] sm:$0xff]
        %v1035 = vsel %vm495, %v1029, 0
        %1037 = vmatpush.msra.mxu0 0.0
        %1038 = vmatpush.msra.mxu0 0.0
        %1039 = vmatpush.msra.mxu0 0.0
        %1040 = vmatpush.msra.mxu0 0.0
        %1041 = vmatpush.msra.mxu0 0.0
        %1042 = vmatpush.msra.mxu0 0.0
        %1043 = vmatpush.msra.mxu0 0.0
        %1044 = vmatpush.msra.mxu0 0.0
        %1045 = vmatpush.msra.mxu0 0.0
        %1046 = vmatpush.msra.mxu0 0.0
        %1047 = vmatpush.msra.mxu0 0.0
        %1048 = vmatpush.msra.mxu0 0.0
        %1049 = vmatpush.msra.mxu0 %v1033
        %1050 = vmatpush.msra.mxu0 %v1032
        %1051 = vmatpush.msra.mxu0 %v1031
        %1052 = vmatpush.msra.mxu0 %v1030
        %1053 = vmatmul.f32.gmra.mxu0 %v1035
        %v1054 = vpop.f32.mrf.mxu0
        %v1055 = vadd.f32 0.0, %v1054
        %1056 = vdwg.mxu0
        %1057 = vst.msk [vmem:[%s485] sm:$0xff] %vm495, %v1055
        %s1058 = sand.u32 %s209, 1
        %s1059 = scalar_lea.sflag [#allocation4], %s1058
        %s1060 = sand.u32 %s209, 1
        %s1061 = smul.addr %s1060, 8
        %s1062 = scalar_lea.vmem [#allocation14], %s1061
        %s1063 = sand.u32 %s235, 1
        %s1064 = scalar_lea.sflag [#allocation16], %s1063
        %s1065 = sand.u32 %s235, 1
        %s1066 = smul.addr %s1065, 32
        %s1067 = scalar_lea.vmem [#allocation15], %s1066
        // Predicated region
        $region77: #{tpu_custom_call.1} parent=47 // pred_check
          %p1068 = pneg %p219
        $region78: #{tpu_custom_call.1} parent=47 // pred_check_branch
          %1070 = sbr.rel (%p1068) target = $region80
        $region79: #{tpu_custom_call.1} parent=47 // pred_region
          %1072 = vsyncadd %s1059, 0
          %s1073 = smul.addr %s34, 8
          %s1074 = scalar_lea.hbm %s7, %s1073
          %s1076 = sshll.u32 %s1062, 4
          %s1077 = int_to_ptr.vmem [resolvable:$true] %s1076
          %s1078 = sshll.u32 %s1074, 4
          %s1079 = int_to_ptr.hbm [resolvable:$true] %s1078
          %1081 = dma.vmem_to_hbm [thread:$0]  %s1077, 128, %s1079, %s1059
        $region80: #{tpu_custom_call.1} parent=47 // pred_fallthru
          _
        // Predicated region
        $region81: #{tpu_custom_call.1} parent=47 // pred_check
          %p1082 = pneg %p245
        $region82: #{tpu_custom_call.1} parent=47 // pred_check_branch
          %1084 = sbr.rel (%p1082) target = $region84
        $region83: #{tpu_custom_call.1} parent=47 // pred_region
          %1086 = vsyncadd %s1064, 0
          %s1087 = smul.addr %s34, 8
          %s1088 = scalar_lea.hbm %s8, %s1087
          %s1089 = sshll.u32 %s1067, 4
          %s1090 = int_to_ptr.vmem [resolvable:$true] %s1089
          %s1091 = sshll.u32 %s1088, 4
          %s1092 = int_to_ptr.hbm [resolvable:$true] %s1091
          %1097 = dma.vmem_to_hbm [thread:$0]  %s1090, 512, %s1092, %s1064, 128, 256, 8
        $region84: #{tpu_custom_call.1} parent=47 // pred_fallthru
          _
      $region48: #{tpu_custom_call.1} parent=5 // pred_fallthru
        _
      %p1098 = scmp.le.s32.totalorder 2, %s29
      // Predicated region
      $region85: #{tpu_custom_call.1} parent=5 // pred_check
        %p1099 = pneg %p1098
      $region86: #{tpu_custom_call.1} parent=5 // pred_check_branch
        %1101 = sbr.rel (%p1099) target = $region88
      $region87: #{tpu_custom_call.1} parent=5 // pred_region
        %s1102 = ssub.s32 %s29, 2
        // Predicated region
        $region89: #{tpu_custom_call.1} parent=87 // pred_check
          %p1103 = pneg %p225
        $region90: #{tpu_custom_call.1} parent=87 // pred_check_branch
          %1105 = sbr.rel (%p1103) target = $region92
        $region91: #{tpu_custom_call.1} parent=87 // pred_region
          %s1106 = sand.u32 %s210, 1
          %s1107 = scalar_lea.sflag [#allocation4], %s1106
          %s1108 = sand.u32 %s210, 1
          %s1109 = smul.addr %s1108, 8
          %s1110 = scalar_lea.vmem [#allocation14], %s1109
          %1112 = dma.done %s1107, 128
        $region92: #{tpu_custom_call.1} parent=87 // pred_fallthru
          _
        // Predicated region
        $region93: #{tpu_custom_call.1} parent=87 // pred_check
          %p1113 = pneg %p251
        $region94: #{tpu_custom_call.1} parent=87 // pred_check_branch
          %1115 = sbr.rel (%p1113) target = $region96
        $region95: #{tpu_custom_call.1} parent=87 // pred_region
          %s1116 = sand.u32 %s236, 1
          %s1117 = scalar_lea.sflag [#allocation16], %s1116
          %s1118 = sand.u32 %s236, 1
          %s1119 = smul.addr %s1118, 32
          %s1120 = scalar_lea.vmem [#allocation15], %s1119
          %1122 = dma.done %s1117, 512
        $region96: #{tpu_custom_call.1} parent=87 // pred_fallthru
          _
      $region88: #{tpu_custom_call.1} parent=5 // pred_fallthru
        _
    $region6: #{tpu_custom_call.1} parent=1 // loop_footer
      %s33 = sadd.s32 1, %s29
    $region7: #{tpu_custom_call.1} parent=1 // loop_footer_branch
      %28 = sbr.rel target = $region3
    $region8: #{tpu_custom_call.1} parent=1 // loop_exit
      _
    %1123 = vsyncpa [#allocation3], 1
    %s1124 = scalar_lea.sflag [#allocation3], 1
    %1125 = vsyncpa %s1124, 1
    %1126 = vsyncpa [#allocation6], 1
    %s1127 = scalar_lea.sflag [#allocation6], 1
    %1128 = vsyncpa %s1127, 1
    %1129 = vsyncpa [#allocation9], 1
    %1130 = vsyncpa [#allocation12], 1
    %1131 = vsyncpa [#allocation4], 1
    %s1132 = scalar_lea.sflag [#allocation4], 1
    %1133 = vsyncpa %s1132, 1
    %1134 = vsyncpa [#allocation16], 1
    %s1135 = scalar_lea.sflag [#allocation16], 1
    %1136 = vsyncpa %s1135, 1

</llo_original>
